<compile_context>
chip_gen: v7x
topology: tpu7x:2x2x1
jax: 0.10.0
libtpu: 0.0.40
codegen_flags: <defaults>
</compile_context>

<pallas_src>
import jax
import jax.numpy as jnp
from jax import lax
from jax.experimental import pallas as pl
from jax.experimental.pallas import tpu as pltpu

BN_EPS = 1e-5


def _make_conv_block_kernel(N, H, W, cin_p, cout):
    """Builds the fused [conv3x3 -> BN(train) -> ReLU] x 2 kernel body."""
    Hp, Wp = H + 2, W + 2
    L = N * Hp * Wp          # full padded grid, flattened (lane axis)
    M = Wp + 1               # halo margin so every tap is a contiguous slice
    NHW = N * H * W          # number of valid (interior) output positions
    inv_n = 1.0 / NHW

    def kernel(xp_ref, m_ref, w1_ref, g1_ref, b1_ref, w2_ref, g2_ref, b2_ref,
               o_ref, p1_ref, y1s_ref, p2_ref):
        # xp_ref : (cin_p, L + 2M)   margin-extended, reflect-padded, channels-first
        # m_ref  : (3, L)            rows: interior mask, col==0 mask, col==Wp-1 mask
        # w1_ref : (cout, 9*cin_p)   stage-1 im2col weights (col = tap*cin_p + c)
        # w2_ref : (cout, 9*cout)    stage-2 im2col weights (col = tap*cout + c)
        # g*,b*  : (cout, 1)         BN affine
        # o_ref  : (cout, L)         lane-dense output over the full padded grid
        # p1_ref : (9*cin_p, L)      stage-1 patch matrix (scratch)
        # y1s_ref: (cout, L + 2M)    padded stage-1 intermediate (scratch)
        # p2_ref : (9*cout, L)       stage-2 patch matrix (scratch)
        interior = m_ref[0:1, :]                                   # (1, L) f32

        # ---------- stage 1: im2col taps are contiguous lane slices ----------
        for kh in range(3):
            for kw in range(3):
                t = kh * 3 + kw
                s = kh * Wp + kw
                p1_ref[t * cin_p:(t + 1) * cin_p, :] = xp_ref[:, s:s + L]

        acc1 = jnp.dot(w1_ref[...], p1_ref[...],
                       preferred_element_type=jnp.float32)         # (cout, L)

        # BN over interior positions only (two-pass: mean, then centered var).
        mean1 = jnp.sum(acc1 * interior, axis=1, keepdims=True) * inv_n
        d1 = acc1 - mean1
        var1 = jnp.sum(d1 * d1 * interior, axis=1, keepdims=True) * inv_n
        scale1 = g1_ref[...] * lax.rsqrt(var1 + BN_EPS)
        shift1 = b1_ref[...] - mean1 * scale1
        y1 = jnp.maximum(acc1 * scale1 + shift1, 0.0)              # (cout, L)

        # ---------- reflect-pad fix of the intermediate (all in VMEM) --------
        # zero halo margins so border-tap reads stay finite
        y1s_ref[:, 0:M] = jnp.zeros((cout, M), jnp.float32)
        y1s_ref[:, M + L:M + L + M] = jnp.zeros((cout, M), jnp.float32)
        y1s_ref[:, M:M + L] = y1
        # top/bottom reflect rows, sourced from the register value (no read-back)
        for n in range(N):
            bv = n * Hp * Wp              # image offset in the value y1
            br = M + bv                   # image offset in the scratch
            y1s_ref[:, br:br + Wp] = y1[:, bv + 2 * Wp:bv + 3 * Wp]
            y1s_ref[:, br + (Hp - 1) * Wp:br + Hp * Wp] = (
                y1[:, bv + (Hp - 3) * Wp:bv + (Hp - 2) * Wp])
        # left/right reflect columns (+corners): one select pass over the slab,
        # sourced from +/-2-lane shifted views of the row-fixed scratch.
        left_src = y1s_ref[:, M + 2:M + 2 + L]
        right_src = y1s_ref[:, M - 2:M - 2 + L]
        cur = y1s_ref[:, M:M + L]
        is_c0 = m_ref[1:2, :] > 0.5
        is_cl = m_ref[2:3, :] > 0.5
        y1s_ref[:, M:M + L] = jnp.where(is_c0, left_src,
                                        jnp.where(is_cl, right_src, cur))

        # ---------- stage 2 --------------------------------------------------
        for kh in range(3):
            for kw in range(3):
                t = kh * 3 + kw
                s = kh * Wp + kw
                p2_ref[t * cout:(t + 1) * cout, :] = y1s_ref[:, s:s + L]

        acc2 = jnp.dot(w2_ref[...], p2_ref[...],
                       preferred_element_type=jnp.float32)         # (cout, L)

        mean2 = jnp.sum(acc2 * interior, axis=1, keepdims=True) * inv_n
        d2 = acc2 - mean2
        var2 = jnp.sum(d2 * d2 * interior, axis=1, keepdims=True) * inv_n
        scale2 = g2_ref[...] * lax.rsqrt(var2 + BN_EPS)
        shift2 = b2_ref[...] - mean2 * scale2

        o_ref[...] = jnp.maximum(acc2 * scale2 + shift2, 0.0).astype(o_ref.dtype)

    return kernel


def _conv_block_pallas(xp_ext, masks, w1f, g1, b1, w2f, g2, b2, *, N, H, W):
    """xp_ext: (cin_p, L + 2M) margin-extended flat slab. Returns (cout, L)."""
    cin_p = xp_ext.shape[0]
    cout = w1f.shape[0]
    Hp, Wp = H + 2, W + 2
    L = N * Hp * Wp
    M = Wp + 1

    kernel = _make_conv_block_kernel(N, H, W, cin_p, cout)
    vmem = pltpu.MemorySpace.VMEM
    return pl.pallas_call(
        kernel,
        out_shape=jax.ShapeDtypeStruct((cout, L), jnp.float32),
        in_specs=[pl.BlockSpec(memory_space=vmem)] * 8,
        out_specs=pl.BlockSpec(memory_space=vmem),
        scratch_shapes=[
            pltpu.VMEM((9 * cin_p, L), jnp.float32),     # stage-1 patch matrix
            pltpu.VMEM((cout, L + 2 * M), jnp.float32),  # padded intermediate
            pltpu.VMEM((9 * cout, L), jnp.float32),      # stage-2 patch matrix
        ],
    )(xp_ext, masks, w1f, g1, b1, w2f, g2, b2)


def init_conv_block_params(key, in_channel, out_channel):
    """Parameters in PyTorch layout plus kernel-ready (prepped) layouts.

    Layout transforms run ONCE here: w1f is (cout, 9*cin_p) with cin zero-padded
    to a multiple of 8 (sublane-aligned patch-row stores), w2f is (cout, 9*cout),
    BN affines are channels-first columns.
    """
    k1, k2, k3, k4, k5, k6 = jax.random.split(key, 6)
    w1 = 0.1 * jax.random.normal(k1, (out_channel, in_channel, 3, 3), jnp.float32)
    w2 = 0.1 * jax.random.normal(k2, (out_channel, out_channel, 3, 3), jnp.float32)
    gamma1 = 1.0 + 0.1 * jax.random.normal(k3, (out_channel,), jnp.float32)
    beta1 = 0.1 * jax.random.normal(k4, (out_channel,), jnp.float32)
    gamma2 = 1.0 + 0.1 * jax.random.normal(k5, (out_channel,), jnp.float32)
    beta2 = 0.1 * jax.random.normal(k6, (out_channel,), jnp.float32)

    cin_p = max(8, ((in_channel + 7) // 8) * 8)           # sublane-align Cin
    w1p = jnp.pad(w1, ((0, 0), (0, cin_p - in_channel), (0, 0), (0, 0)))
    # column index of w1f = (kh*3+kw)*cin_p + c  (matches patch-matrix rows)
    w1f = jnp.transpose(w1p, (0, 2, 3, 1)).reshape(out_channel, 9 * cin_p)
    # column index of w2f = (kh*3+kw)*cout + c
    w2f = jnp.transpose(w2, (0, 2, 3, 1)).reshape(out_channel, 9 * out_channel)
    g1 = gamma1.reshape(out_channel, 1)
    b1 = beta1.reshape(out_channel, 1)
    g2 = gamma2.reshape(out_channel, 1)
    b2 = beta2.reshape(out_channel, 1)

    return dict(w1=w1, w2=w2, gamma1=gamma1, beta1=beta1,
                gamma2=gamma2, beta2=beta2,
                w1f=w1f, w2f=w2f, g1=g1, b1=b1, g2=g2, b2=b2, cin_p=cin_p)


@jax.jit
def conv_block_forward(x_nchw, params):
    """Pallas forward. Input / output in NCHW to match PyTorch."""
    N, Cin, H, W = x_nchw.shape
    assert H >= 2 and W >= 2, "reflect padding requires H >= 2 and W >= 2"
    Hp, Wp = H + 2, W + 2
    L = N * Hp * Wp
    M = Wp + 1
    cout = params["w1f"].shape[0]
    cin_p = params["w1f"].shape[1] // 9

    # channels-first, reflect-padded, zero-padded channels, flattened + margins
    x = x_nchw.astype(jnp.float32)
    xp = jnp.pad(x, ((0, 0), (0, 0), (1, 1), (1, 1)), mode="reflect")
    xp = jnp.pad(xp, ((0, 0), (0, cin_p - Cin), (0, 0), (0, 0)))
    xp_cf = jnp.transpose(xp, (1, 0, 2, 3)).reshape(cin_p, L)
    xp_ext = jnp.pad(xp_cf, ((0, 0), (M, M)))                       # (cin_p, L+2M)

    # interior / border-column masks over the flat padded grid
    pos = jnp.arange(L, dtype=jnp.int32)
    row = (pos % (Hp * Wp)) // Wp
    col = pos % Wp
    interior = ((row >= 1) & (row <= H) & (col >= 1) & (col <= W))
    masks = jnp.stack([interior.astype(jnp.float32),
                       (col == 0).astype(jnp.float32),
                       (col == Wp - 1).astype(jnp.float32)], axis=0)  # (3, L)

    out_flat = _conv_block_pallas(xp_ext, masks,
                                  params["w1f"], params["g1"], params["b1"],
                                  params["w2f"], params["g2"], params["b2"],
                                  N=N, H=H, W=W)                     # (cout, L)

    out = out_flat.reshape(cout, N, Hp, Wp)[:, :, 1:H + 1, 1:W + 1]
    return jnp.transpose(out, (1, 0, 2, 3))                         # NCHW


def _reference_forward(x_nchw, params):
    """Pure-JAX reference (lax.conv) for a correctness check."""
    def stage(x, w_oihw, gamma, beta):
        xh = jnp.transpose(x, (0, 2, 3, 1))
        xpad = jnp.pad(xh, ((0, 0), (1, 1), (1, 1), (0, 0)), mode="reflect")
        w = jnp.transpose(w_oihw, (2, 3, 1, 0))  # HWIO
        y = lax.conv_general_dilated(
            xpad, w, window_strides=(1, 1), padding="VALID",
            dimension_numbers=("NHWC", "HWIO", "NHWC"))
        mean = jnp.mean(y, axis=(0, 1, 2), keepdims=True)
        var = jnp.mean((y - mean) ** 2, axis=(0, 1, 2), keepdims=True)
        y = (y - mean) * lax.rsqrt(var + BN_EPS) * gamma + beta
        y = jnp.maximum(y, 0.0)
        return jnp.transpose(y, (0, 3, 1, 2))

    y = stage(x_nchw, params["w1"], params["gamma1"], params["beta1"])
    y = stage(y, params["w2"], params["gamma2"], params["beta2"])
    return y


if __name__ == "__main__":
    key = jax.random.PRNGKey(0)
    kx, kp = jax.random.split(key)

    N, Cin, Cout, H, W = 2, 4, 8, 16, 16
    x = jax.random.normal(kx, (N, Cin, H, W), jnp.float32)
    params = init_conv_block_params(kp, Cin, Cout)

    out = jax.block_until_ready(conv_block_forward(x, params))
    assert out.shape == (N, Cout, H, W), out.shape

    ref = _reference_forward(x, params)
    max_err = float(jnp.max(jnp.abs(out - ref)))
    assert jnp.allclose(out, ref, rtol=1e-3, atol=1e-2), (
        f"mismatch vs reference: max abs err = {max_err}")

    print("KERNEL_OK")
</pallas_src>

<mosaic_0001>
module attributes {stable_mosaic.version = 11 : i64} {
  func.func @kernel(%arg0: memref<8x686xf32, #tpu.memory_space<vmem>>, %arg1: memref<3x648xf32, #tpu.memory_space<vmem>>, %arg2: memref<8x72xf32, #tpu.memory_space<vmem>>, %arg3: memref<8x1xf32, #tpu.memory_space<vmem>>, %arg4: memref<8x1xf32, #tpu.memory_space<vmem>>, %arg5: memref<8x72xf32, #tpu.memory_space<vmem>>, %arg6: memref<8x1xf32, #tpu.memory_space<vmem>>, %arg7: memref<8x1xf32, #tpu.memory_space<vmem>>, %arg8: memref<8x648xf32, #tpu.memory_space<vmem>>, %arg9: memref<72x648xf32, #tpu.memory_space<vmem>>, %arg10: memref<8x686xf32, #tpu.memory_space<vmem>>, %arg11: memref<72x648xf32, #tpu.memory_space<vmem>>) attributes {dimension_semantics = [], scalar_prefetch = 0 : i64, scratch_operands = 3 : i64, tpu.core_type = #tpu.core_type<tc>} {
    %c0 = arith.constant 0 : index
    %c0_0 = arith.constant 0 : index
    %0 = vector.load %arg1[%c0, %c0_0] : memref<3x648xf32, #tpu.memory_space<vmem>>, vector<1x648xf32>
    %c0_1 = arith.constant 0 : index
    %c0_2 = arith.constant 0 : index
    %1 = vector.load %arg0[%c0_1, %c0_2] : memref<8x686xf32, #tpu.memory_space<vmem>>, vector<8x648xf32>
    %c0_3 = arith.constant 0 : index
    %c0_4 = arith.constant 0 : index
    %2 = vector.load %arg9[%c0_3, %c0_4] : memref<72x648xf32, #tpu.memory_space<vmem>>, vector<8x648xf32>
    tpu.vector_store %arg9[%c0_3, %c0_4], %1 {strides = array<i32>} : memref<72x648xf32, #tpu.memory_space<vmem>>, vector<8x648xf32>,
    %c0_5 = arith.constant 0 : index
    %c1 = arith.constant 1 : index
    %3 = vector.load %arg0[%c0_5, %c1] : memref<8x686xf32, #tpu.memory_space<vmem>>, vector<8x648xf32>
    %c8 = arith.constant 8 : index
    %c0_6 = arith.constant 0 : index
    %4 = vector.load %arg9[%c8, %c0_6] : memref<72x648xf32, #tpu.memory_space<vmem>>, vector<8x648xf32>
    tpu.vector_store %arg9[%c8, %c0_6], %3 {strides = array<i32>} : memref<72x648xf32, #tpu.memory_space<vmem>>, vector<8x648xf32>,
    %c0_7 = arith.constant 0 : index
    %c2 = arith.constant 2 : index
    %5 = vector.load %arg0[%c0_7, %c2] : memref<8x686xf32, #tpu.memory_space<vmem>>, vector<8x648xf32>
    %c16 = arith.constant 16 : index
    %c0_8 = arith.constant 0 : index
    %6 = vector.load %arg9[%c16, %c0_8] : memref<72x648xf32, #tpu.memory_space<vmem>>, vector<8x648xf32>
    tpu.vector_store %arg9[%c16, %c0_8], %5 {strides = array<i32>} : memref<72x648xf32, #tpu.memory_space<vmem>>, vector<8x648xf32>,
    %c0_9 = arith.constant 0 : index
    %c18 = arith.constant 18 : index
    %7 = vector.load %arg0[%c0_9, %c18] : memref<8x686xf32, #tpu.memory_space<vmem>>, vector<8x648xf32>
    %c24 = arith.constant 24 : index
    %c0_10 = arith.constant 0 : index
    %8 = vector.load %arg9[%c24, %c0_10] : memref<72x648xf32, #tpu.memory_space<vmem>>, vector<8x648xf32>
    tpu.vector_store %arg9[%c24, %c0_10], %7 {strides = array<i32>} : memref<72x648xf32, #tpu.memory_space<vmem>>, vector<8x648xf32>,
    %c0_11 = arith.constant 0 : index
    %c19 = arith.constant 19 : index
    %9 = vector.load %arg0[%c0_11, %c19] : memref<8x686xf32, #tpu.memory_space<vmem>>, vector<8x648xf32>
    %c32 = arith.constant 32 : index
    %c0_12 = arith.constant 0 : index
    %10 = vector.load %arg9[%c32, %c0_12] : memref<72x648xf32, #tpu.memory_space<vmem>>, vector<8x648xf32>
    tpu.vector_store %arg9[%c32, %c0_12], %9 {strides = array<i32>} : memref<72x648xf32, #tpu.memory_space<vmem>>, vector<8x648xf32>,
    %c0_13 = arith.constant 0 : index
    %c20 = arith.constant 20 : index
    %11 = vector.load %arg0[%c0_13, %c20] : memref<8x686xf32, #tpu.memory_space<vmem>>, vector<8x648xf32>
    %c40 = arith.constant 40 : index
    %c0_14 = arith.constant 0 : index
    %12 = vector.load %arg9[%c40, %c0_14] : memref<72x648xf32, #tpu.memory_space<vmem>>, vector<8x648xf32>
    tpu.vector_store %arg9[%c40, %c0_14], %11 {strides = array<i32>} : memref<72x648xf32, #tpu.memory_space<vmem>>, vector<8x648xf32>,
    %c0_15 = arith.constant 0 : index
    %c36 = arith.constant 36 : index
    %13 = vector.load %arg0[%c0_15, %c36] : memref<8x686xf32, #tpu.memory_space<vmem>>, vector<8x648xf32>
    %c48 = arith.constant 48 : index
    %c0_16 = arith.constant 0 : index
    %14 = vector.load %arg9[%c48, %c0_16] : memref<72x648xf32, #tpu.memory_space<vmem>>, vector<8x648xf32>
    tpu.vector_store %arg9[%c48, %c0_16], %13 {strides = array<i32>} : memref<72x648xf32, #tpu.memory_space<vmem>>, vector<8x648xf32>,
    %c0_17 = arith.constant 0 : index
    %c37 = arith.constant 37 : index
    %15 = vector.load %arg0[%c0_17, %c37] : memref<8x686xf32, #tpu.memory_space<vmem>>, vector<8x648xf32>
    %c56 = arith.constant 56 : index
    %c0_18 = arith.constant 0 : index
    %16 = vector.load %arg9[%c56, %c0_18] : memref<72x648xf32, #tpu.memory_space<vmem>>, vector<8x648xf32>
    tpu.vector_store %arg9[%c56, %c0_18], %15 {strides = array<i32>} : memref<72x648xf32, #tpu.memory_space<vmem>>, vector<8x648xf32>,
    %c0_19 = arith.constant 0 : index
    %c38 = arith.constant 38 : index
    %17 = vector.load %arg0[%c0_19, %c38] : memref<8x686xf32, #tpu.memory_space<vmem>>, vector<8x648xf32>
    %c64 = arith.constant 64 : index
    %c0_20 = arith.constant 0 : index
    %18 = vector.load %arg9[%c64, %c0_20] : memref<72x648xf32, #tpu.memory_space<vmem>>, vector<8x648xf32>
    tpu.vector_store %arg9[%c64, %c0_20], %17 {strides = array<i32>} : memref<72x648xf32, #tpu.memory_space<vmem>>, vector<8x648xf32>,
    %c0_21 = arith.constant 0 : index
    %c0_22 = arith.constant 0 : index
    %19 = vector.load %arg2[%c0_21, %c0_22] : memref<8x72xf32, #tpu.memory_space<vmem>>, vector<8x72xf32>
    %c0_23 = arith.constant 0 : index
    %c0_24 = arith.constant 0 : index
    %20 = vector.load %arg9[%c0_23, %c0_24] : memref<72x648xf32, #tpu.memory_space<vmem>>, vector<72x648xf32>
    %cst = arith.constant dense<0.000000e+00> : vector<8x648xf32>
    %21 = tpu.matmul %19, %20, %cst {dimension_numbers = #tpu.dot_dimension_numbers<[1], [0], [0], [1], [0, 0, 1, 1], [], []>} : vector<8x72xf32>, vector<72x648xf32>, vector<8x648xf32> -> vector<8x648xf32>
    %22 = vector.broadcast %0 : vector<1x648xf32> to vector<8x648xf32>
    %23 = arith.mulf %21, %22 : vector<8x648xf32>
    %cst_25 = arith.constant dense<0.000000e+00> : vector<8xf32>
    %24 = vector.multi_reduction <add>, %23, %cst_25 [1] : vector<8x648xf32> to vector<8xf32>
    %25 = vector.shape_cast %24 : vector<8xf32> to vector<8x1xf32>
    %cst_26 = arith.constant 0.001953125 : f32
    %26 = vector.broadcast %cst_26 : f32 to vector<8x1xf32>
    %27 = arith.mulf %25, %26 : vector<8x1xf32>
    %28 = vector.broadcast %27 : vector<8x1xf32> to vector<8x648xf32>
    %29 = arith.subf %21, %28 : vector<8x648xf32>
    %30 = arith.mulf %29, %29 : vector<8x648xf32>
    %31 = vector.broadcast %0 : vector<1x648xf32> to vector<8x648xf32>
    %32 = arith.mulf %30, %31 : vector<8x648xf32>
    %cst_27 = arith.constant dense<0.000000e+00> : vector<8xf32>
    %33 = vector.multi_reduction <add>, %32, %cst_27 [1] : vector<8x648xf32> to vector<8xf32>
    %34 = vector.shape_cast %33 : vector<8xf32> to vector<8x1xf32>
    %cst_28 = arith.constant 0.001953125 : f32
    %35 = vector.broadcast %cst_28 : f32 to vector<8x1xf32>
    %36 = arith.mulf %34, %35 : vector<8x1xf32>
    %c0_29 = arith.constant 0 : index
    %c0_30 = arith.constant 0 : index
    %37 = vector.load %arg3[%c0_29, %c0_30] : memref<8x1xf32, #tpu.memory_space<vmem>>, vector<8x1xf32>
    %cst_31 = arith.constant 9.99999974E-6 : f32
    %38 = vector.broadcast %cst_31 : f32 to vector<8x1xf32>
    %39 = arith.addf %36, %38 : vector<8x1xf32>
    %40 = math.rsqrt %39 : vector<8x1xf32>
    %41 = arith.mulf %37, %40 : vector<8x1xf32>
    %c0_32 = arith.constant 0 : index
    %c0_33 = arith.constant 0 : index
    %42 = vector.load %arg4[%c0_32, %c0_33] : memref<8x1xf32, #tpu.memory_space<vmem>>, vector<8x1xf32>
    %43 = arith.mulf %27, %41 : vector<8x1xf32>
    %44 = arith.subf %42, %43 : vector<8x1xf32>
    %45 = vector.broadcast %41 : vector<8x1xf32> to vector<8x648xf32>
    %46 = arith.mulf %21, %45 : vector<8x648xf32>
    %47 = vector.broadcast %44 : vector<8x1xf32> to vector<8x648xf32>
    %48 = arith.addf %46, %47 : vector<8x648xf32>
    %cst_34 = arith.constant 0.000000e+00 : f32
    %49 = vector.broadcast %cst_34 : f32 to vector<8x648xf32>
    %50 = arith.maximumf %48, %49 : vector<8x648xf32>
    %cst_35 = arith.constant 0.000000e+00 : f32
    %51 = vector.broadcast %cst_35 : f32 to vector<8x19xf32>
    %c0_36 = arith.constant 0 : index
    %c0_37 = arith.constant 0 : index
    %52 = vector.load %arg10[%c0_36, %c0_37] : memref<8x686xf32, #tpu.memory_space<vmem>>, vector<8x19xf32>
    tpu.vector_store %arg10[%c0_36, %c0_37], %51 {strides = array<i32>} : memref<8x686xf32, #tpu.memory_space<vmem>>, vector<8x19xf32>,
    %cst_38 = arith.constant 0.000000e+00 : f32
    %53 = vector.broadcast %cst_38 : f32 to vector<8x19xf32>
    %c0_39 = arith.constant 0 : index
    %c667 = arith.constant 667 : index
    %54 = vector.load %arg10[%c0_39, %c667] : memref<8x686xf32, #tpu.memory_space<vmem>>, vector<8x19xf32>
    tpu.vector_store %arg10[%c0_39, %c667], %53 {strides = array<i32>} : memref<8x686xf32, #tpu.memory_space<vmem>>, vector<8x19xf32>,
    %c0_40 = arith.constant 0 : index
    %c19_41 = arith.constant 19 : index
    %55 = vector.load %arg10[%c0_40, %c19_41] : memref<8x686xf32, #tpu.memory_space<vmem>>, vector<8x648xf32>
    tpu.vector_store %arg10[%c0_40, %c19_41], %50 {strides = array<i32>} : memref<8x686xf32, #tpu.memory_space<vmem>>, vector<8x648xf32>,
    %56 = vector.extract_strided_slice %50 {offsets = [0, 36], sizes = [8, 18], strides = [1, 1]} : vector<8x648xf32> to vector<8x18xf32>
    %c0_42 = arith.constant 0 : index
    %c19_43 = arith.constant 19 : index
    %57 = vector.load %arg10[%c0_42, %c19_43] : memref<8x686xf32, #tpu.memory_space<vmem>>, vector<8x18xf32>
    tpu.vector_store %arg10[%c0_42, %c19_43], %56 {strides = array<i32>} : memref<8x686xf32, #tpu.memory_space<vmem>>, vector<8x18xf32>,
    %58 = vector.extract_strided_slice %50 {offsets = [0, 270], sizes = [8, 18], strides = [1, 1]} : vector<8x648xf32> to vector<8x18xf32>
    %c0_44 = arith.constant 0 : index
    %c325 = arith.constant 325 : index
    %59 = vector.load %arg10[%c0_44, %c325] : memref<8x686xf32, #tpu.memory_space<vmem>>, vector<8x18xf32>
    tpu.vector_store %arg10[%c0_44, %c325], %58 {strides = array<i32>} : memref<8x686xf32, #tpu.memory_space<vmem>>, vector<8x18xf32>,
    %60 = vector.extract_strided_slice %50 {offsets = [0, 360], sizes = [8, 18], strides = [1, 1]} : vector<8x648xf32> to vector<8x18xf32>
    %c0_45 = arith.constant 0 : index
    %c343 = arith.constant 343 : index
    %61 = vector.load %arg10[%c0_45, %c343] : memref<8x686xf32, #tpu.memory_space<vmem>>, vector<8x18xf32>
    tpu.vector_store %arg10[%c0_45, %c343], %60 {strides = array<i32>} : memref<8x686xf32, #tpu.memory_space<vmem>>, vector<8x18xf32>,
    %62 = vector.extract_strided_slice %50 {offsets = [0, 594], sizes = [8, 18], strides = [1, 1]} : vector<8x648xf32> to vector<8x18xf32>
    %c0_46 = arith.constant 0 : index
    %c649 = arith.constant 649 : index
    %63 = vector.load %arg10[%c0_46, %c649] : memref<8x686xf32, #tpu.memory_space<vmem>>, vector<8x18xf32>
    tpu.vector_store %arg10[%c0_46, %c649], %62 {strides = array<i32>} : memref<8x686xf32, #tpu.memory_space<vmem>>, vector<8x18xf32>,
    %c0_47 = arith.constant 0 : index
    %c21 = arith.constant 21 : index
    %64 = vector.load %arg10[%c0_47, %c21] : memref<8x686xf32, #tpu.memory_space<vmem>>, vector<8x648xf32>
    %c0_48 = arith.constant 0 : index
    %c17 = arith.constant 17 : index
    %65 = vector.load %arg10[%c0_48, %c17] : memref<8x686xf32, #tpu.memory_space<vmem>>, vector<8x648xf32>
    %c0_49 = arith.constant 0 : index
    %c19_50 = arith.constant 19 : index
    %66 = vector.load %arg10[%c0_49, %c19_50] : memref<8x686xf32, #tpu.memory_space<vmem>>, vector<8x648xf32>
    %c1_51 = arith.constant 1 : index
    %c0_52 = arith.constant 0 : index
    %67 = vector.load %arg1[%c1_51, %c0_52] : memref<3x648xf32, #tpu.memory_space<vmem>>, vector<1x648xf32>
    %cst_53 = arith.constant 5.000000e-01 : f32
    %68 = vector.broadcast %cst_53 : f32 to vector<1x648xf32>
    %69 = arith.cmpf ogt, %67, %68 : vector<1x648xf32>
    %c2_54 = arith.constant 2 : index
    %c0_55 = arith.constant 0 : index
    %70 = vector.load %arg1[%c2_54, %c0_55] : memref<3x648xf32, #tpu.memory_space<vmem>>, vector<1x648xf32>
    %cst_56 = arith.constant 5.000000e-01 : f32
    %71 = vector.broadcast %cst_56 : f32 to vector<1x648xf32>
    %72 = arith.cmpf ogt, %70, %71 : vector<1x648xf32>
    %73 = vector.shape_cast %72 : vector<1x648xi1> to vector<1x648xi1>
    %74 = vector.broadcast %73 : vector<1x648xi1> to vector<8x648xi1>
    %75 = arith.select %74, %65, %66 : vector<8x648xi1>, vector<8x648xf32>
    %76 = vector.shape_cast %69 : vector<1x648xi1> to vector<1x648xi1>
    %77 = vector.broadcast %76 : vector<1x648xi1> to vector<8x648xi1>
    %78 = arith.select %77, %64, %75 : vector<8x648xi1>, vector<8x648xf32>
    %c0_57 = arith.constant 0 : index
    %c19_58 = arith.constant 19 : index
    %79 = vector.load %arg10[%c0_57, %c19_58] : memref<8x686xf32, #tpu.memory_space<vmem>>, vector<8x648xf32>
    tpu.vector_store %arg10[%c0_57, %c19_58], %78 {strides = array<i32>} : memref<8x686xf32, #tpu.memory_space<vmem>>, vector<8x648xf32>,
    %c0_59 = arith.constant 0 : index
    %c0_60 = arith.constant 0 : index
    %80 = vector.load %arg10[%c0_59, %c0_60] : memref<8x686xf32, #tpu.memory_space<vmem>>, vector<8x648xf32>
    %c0_61 = arith.constant 0 : index
    %c0_62 = arith.constant 0 : index
    %81 = vector.load %arg11[%c0_61, %c0_62] : memref<72x648xf32, #tpu.memory_space<vmem>>, vector<8x648xf32>
    tpu.vector_store %arg11[%c0_61, %c0_62], %80 {strides = array<i32>} : memref<72x648xf32, #tpu.memory_space<vmem>>, vector<8x648xf32>,
    %c0_63 = arith.constant 0 : index
    %c1_64 = arith.constant 1 : index
    %82 = vector.load %arg10[%c0_63, %c1_64] : memref<8x686xf32, #tpu.memory_space<vmem>>, vector<8x648xf32>
    %c8_65 = arith.constant 8 : index
    %c0_66 = arith.constant 0 : index
    %83 = vector.load %arg11[%c8_65, %c0_66] : memref<72x648xf32, #tpu.memory_space<vmem>>, vector<8x648xf32>
    tpu.vector_store %arg11[%c8_65, %c0_66], %82 {strides = array<i32>} : memref<72x648xf32, #tpu.memory_space<vmem>>, vector<8x648xf32>,
    %c0_67 = arith.constant 0 : index
    %c2_68 = arith.constant 2 : index
    %84 = vector.load %arg10[%c0_67, %c2_68] : memref<8x686xf32, #tpu.memory_space<vmem>>, vector<8x648xf32>
    %c16_69 = arith.constant 16 : index
    %c0_70 = arith.constant 0 : index
    %85 = vector.load %arg11[%c16_69, %c0_70] : memref<72x648xf32, #tpu.memory_space<vmem>>, vector<8x648xf32>
    tpu.vector_store %arg11[%c16_69, %c0_70], %84 {strides = array<i32>} : memref<72x648xf32, #tpu.memory_space<vmem>>, vector<8x648xf32>,
    %c0_71 = arith.constant 0 : index
    %c18_72 = arith.constant 18 : index
    %86 = vector.load %arg10[%c0_71, %c18_72] : memref<8x686xf32, #tpu.memory_space<vmem>>, vector<8x648xf32>
    %c24_73 = arith.constant 24 : index
    %c0_74 = arith.constant 0 : index
    %87 = vector.load %arg11[%c24_73, %c0_74] : memref<72x648xf32, #tpu.memory_space<vmem>>, vector<8x648xf32>
    tpu.vector_store %arg11[%c24_73, %c0_74], %86 {strides = array<i32>} : memref<72x648xf32, #tpu.memory_space<vmem>>, vector<8x648xf32>,
    %c0_75 = arith.constant 0 : index
    %c19_76 = arith.constant 19 : index
    %88 = vector.load %arg10[%c0_75, %c19_76] : memref<8x686xf32, #tpu.memory_space<vmem>>, vector<8x648xf32>
    %c32_77 = arith.constant 32 : index
    %c0_78 = arith.constant 0 : index
    %89 = vector.load %arg11[%c32_77, %c0_78] : memref<72x648xf32, #tpu.memory_space<vmem>>, vector<8x648xf32>
    tpu.vector_store %arg11[%c32_77, %c0_78], %88 {strides = array<i32>} : memref<72x648xf32, #tpu.memory_space<vmem>>, vector<8x648xf32>,
    %c0_79 = arith.constant 0 : index
    %c20_80 = arith.constant 20 : index
    %90 = vector.load %arg10[%c0_79, %c20_80] : memref<8x686xf32, #tpu.memory_space<vmem>>, vector<8x648xf32>
    %c40_81 = arith.constant 40 : index
    %c0_82 = arith.constant 0 : index
    %91 = vector.load %arg11[%c40_81, %c0_82] : memref<72x648xf32, #tpu.memory_space<vmem>>, vector<8x648xf32>
    tpu.vector_store %arg11[%c40_81, %c0_82], %90 {strides = array<i32>} : memref<72x648xf32, #tpu.memory_space<vmem>>, vector<8x648xf32>,
    %c0_83 = arith.constant 0 : index
    %c36_84 = arith.constant 36 : index
    %92 = vector.load %arg10[%c0_83, %c36_84] : memref<8x686xf32, #tpu.memory_space<vmem>>, vector<8x648xf32>
    %c48_85 = arith.constant 48 : index
    %c0_86 = arith.constant 0 : index
    %93 = vector.load %arg11[%c48_85, %c0_86] : memref<72x648xf32, #tpu.memory_space<vmem>>, vector<8x648xf32>
    tpu.vector_store %arg11[%c48_85, %c0_86], %92 {strides = array<i32>} : memref<72x648xf32, #tpu.memory_space<vmem>>, vector<8x648xf32>,
    %c0_87 = arith.constant 0 : index
    %c37_88 = arith.constant 37 : index
    %94 = vector.load %arg10[%c0_87, %c37_88] : memref<8x686xf32, #tpu.memory_space<vmem>>, vector<8x648xf32>
    %c56_89 = arith.constant 56 : index
    %c0_90 = arith.constant 0 : index
    %95 = vector.load %arg11[%c56_89, %c0_90] : memref<72x648xf32, #tpu.memory_space<vmem>>, vector<8x648xf32>
    tpu.vector_store %arg11[%c56_89, %c0_90], %94 {strides = array<i32>} : memref<72x648xf32, #tpu.memory_space<vmem>>, vector<8x648xf32>,
    %c0_91 = arith.constant 0 : index
    %c38_92 = arith.constant 38 : index
    %96 = vector.load %arg10[%c0_91, %c38_92] : memref<8x686xf32, #tpu.memory_space<vmem>>, vector<8x648xf32>
    %c64_93 = arith.constant 64 : index
    %c0_94 = arith.constant 0 : index
    %97 = vector.load %arg11[%c64_93, %c0_94] : memref<72x648xf32, #tpu.memory_space<vmem>>, vector<8x648xf32>
    tpu.vector_store %arg11[%c64_93, %c0_94], %96 {strides = array<i32>} : memref<72x648xf32, #tpu.memory_space<vmem>>, vector<8x648xf32>,
    %c0_95 = arith.constant 0 : index
    %c0_96 = arith.constant 0 : index
    %98 = vector.load %arg5[%c0_95, %c0_96] : memref<8x72xf32, #tpu.memory_space<vmem>>, vector<8x72xf32>
    %c0_97 = arith.constant 0 : index
    %c0_98 = arith.constant 0 : index
    %99 = vector.load %arg11[%c0_97, %c0_98] : memref<72x648xf32, #tpu.memory_space<vmem>>, vector<72x648xf32>
    %cst_99 = arith.constant dense<0.000000e+00> : vector<8x648xf32>
    %100 = tpu.matmul %98, %99, %cst_99 {dimension_numbers = #tpu.dot_dimension_numbers<[1], [0], [0], [1], [0, 0, 1, 1], [], []>} : vector<8x72xf32>, vector<72x648xf32>, vector<8x648xf32> -> vector<8x648xf32>
    %101 = vector.broadcast %0 : vector<1x648xf32> to vector<8x648xf32>
    %102 = arith.mulf %100, %101 : vector<8x648xf32>
    %cst_100 = arith.constant dense<0.000000e+00> : vector<8xf32>
    %103 = vector.multi_reduction <add>, %102, %cst_100 [1] : vector<8x648xf32> to vector<8xf32>
    %104 = vector.shape_cast %103 : vector<8xf32> to vector<8x1xf32>
    %cst_101 = arith.constant 0.001953125 : f32
    %105 = vector.broadcast %cst_101 : f32 to vector<8x1xf32>
    %106 = arith.mulf %104, %105 : vector<8x1xf32>
    %107 = vector.broadcast %106 : vector<8x1xf32> to vector<8x648xf32>
    %108 = arith.subf %100, %107 : vector<8x648xf32>
    %109 = arith.mulf %108, %108 : vector<8x648xf32>
    %110 = vector.broadcast %0 : vector<1x648xf32> to vector<8x648xf32>
    %111 = arith.mulf %109, %110 : vector<8x648xf32>
    %cst_102 = arith.constant dense<0.000000e+00> : vector<8xf32>
    %112 = vector.multi_reduction <add>, %111, %cst_102 [1] : vector<8x648xf32> to vector<8xf32>
    %113 = vector.shape_cast %112 : vector<8xf32> to vector<8x1xf32>
    %cst_103 = arith.constant 0.001953125 : f32
    %114 = vector.broadcast %cst_103 : f32 to vector<8x1xf32>
    %115 = arith.mulf %113, %114 : vector<8x1xf32>
    %c0_104 = arith.constant 0 : index
    %c0_105 = arith.constant 0 : index
    %116 = vector.load %arg6[%c0_104, %c0_105] : memref<8x1xf32, #tpu.memory_space<vmem>>, vector<8x1xf32>
    %cst_106 = arith.constant 9.99999974E-6 : f32
    %117 = vector.broadcast %cst_106 : f32 to vector<8x1xf32>
    %118 = arith.addf %115, %117 : vector<8x1xf32>
    %119 = math.rsqrt %118 : vector<8x1xf32>
    %120 = arith.mulf %116, %119 : vector<8x1xf32>
    %c0_107 = arith.constant 0 : index
    %c0_108 = arith.constant 0 : index
    %121 = vector.load %arg7[%c0_107, %c0_108] : memref<8x1xf32, #tpu.memory_space<vmem>>, vector<8x1xf32>
    %122 = arith.mulf %106, %120 : vector<8x1xf32>
    %123 = arith.subf %121, %122 : vector<8x1xf32>
    %124 = vector.broadcast %120 : vector<8x1xf32> to vector<8x648xf32>
    %125 = arith.mulf %100, %124 : vector<8x648xf32>
    %126 = vector.broadcast %123 : vector<8x1xf32> to vector<8x648xf32>
    %127 = arith.addf %125, %126 : vector<8x648xf32>
    %cst_109 = arith.constant 0.000000e+00 : f32
    %128 = vector.broadcast %cst_109 : f32 to vector<8x648xf32>
    %129 = arith.maximumf %127, %128 : vector<8x648xf32>
    %c0_110 = arith.constant 0 : index
    %c0_111 = arith.constant 0 : index
    %130 = vector.load %arg8[%c0_110, %c0_111] : memref<8x648xf32, #tpu.memory_space<vmem>>, vector<8x648xf32>
    tpu.vector_store %arg8[%c0_110, %c0_111], %129 {strides = array<i32>} : memref<8x648xf32, #tpu.memory_space<vmem>>, vector<8x648xf32>,
    return
  }
}

</mosaic_0001>

<llo_original>
// kernel: conv_block_forward.1
$region0: #{conv_block_forward.1}
  #allocation0 [shape = 'u32[]', space=smem, size = 0x4, offset = 0x4, fixed_abs, tag = 'smem constant byte address 0x4 - core index']
  #allocation1 [shape = 'u32[144,128]{1,0:T(1,128)}', space=vmem, size = 0x12000, scoped, tag = 'internal scratch']
  #allocation2 [shape = 'f32[72,648]{1,0:T(8,128)}', space=vmem, size = 0x36000, scoped, tag = 'scratch operand']
  #allocation3 [shape = 'f32[8,686]{1,0:T(8,128)}', space=vmem, size = 0x6000, scoped, tag = 'scratch operand']
  #allocation4 [shape = 'f32[72,648]{1,0:T(8,128)}', space=vmem, size = 0x36000, scoped, tag = 'scratch operand']
  %s0 = inlined_call_operand.vmem [shape: f32[8,686], index: 0, kind: input, shape index: {}]
  %s1 = inlined_call_operand.vmem [shape: f32[3,648], index: 1, kind: input, shape index: {}]
  %s2 = inlined_call_operand.vmem [shape: f32[8,72], index: 2, kind: input, shape index: {}]
  %s3 = inlined_call_operand.vmem [shape: f32[8,1], index: 3, kind: input, shape index: {}]
  %s4 = inlined_call_operand.vmem [shape: f32[8,1], index: 4, kind: input, shape index: {}]
  %s5 = inlined_call_operand.vmem [shape: f32[8,72], index: 5, kind: input, shape index: {}]
  %s6 = inlined_call_operand.vmem [shape: f32[8,1], index: 6, kind: input, shape index: {}]
  %s7 = inlined_call_operand.vmem [shape: f32[8,1], index: 7, kind: input, shape index: {}]
  %s8 = inlined_call_operand.vmem [shape: f32[8,648], index: 8, kind: output, shape index: {}]
  %s9 = sld [smem:[#allocation0]]
  $region42: #{conv_block_forward.1} parent=0
    _
  %s11 = ssub.s32 1, %s9
  %s12 = scalar_select 0, %s11, %s9
  // Predicated region
  $region2: #{conv_block_forward.1} parent=0 // pred_check
    _
  $region3: #{conv_block_forward.1} parent=0 // pred_check_branch
    %14 = sbr.rel (0) target = $region5
  $region4: #{conv_block_forward.1} parent=0 // pred_region
    _
  $region5: #{conv_block_forward.1} parent=0 // pred_fallthru
    _
  // Predicated region
  $region6: #{conv_block_forward.1} parent=0 // pred_check
    _
  $region7: #{conv_block_forward.1} parent=0 // pred_check_branch
    %16 = sbr.rel (0) target = $region9
  $region8: #{conv_block_forward.1} parent=0 // pred_region
    _
  $region9: #{conv_block_forward.1} parent=0 // pred_fallthru
    _
  // Predicated region
  $region10: #{conv_block_forward.1} parent=0 // pred_check
    _
  $region11: #{conv_block_forward.1} parent=0 // pred_check_branch
    %18 = sbr.rel (0) target = $region13
  $region12: #{conv_block_forward.1} parent=0 // pred_region
    _
  $region13: #{conv_block_forward.1} parent=0 // pred_fallthru
    _
  // Predicated region
  $region14: #{conv_block_forward.1} parent=0 // pred_check
    _
  $region15: #{conv_block_forward.1} parent=0 // pred_check_branch
    %20 = sbr.rel (0) target = $region17
  $region16: #{conv_block_forward.1} parent=0 // pred_region
    _
  $region17: #{conv_block_forward.1} parent=0 // pred_fallthru
    _
  // Predicated region
  $region18: #{conv_block_forward.1} parent=0 // pred_check
    _
  $region19: #{conv_block_forward.1} parent=0 // pred_check_branch
    %22 = sbr.rel (0) target = $region21
  $region20: #{conv_block_forward.1} parent=0 // pred_region
    _
  $region21: #{conv_block_forward.1} parent=0 // pred_fallthru
    _
  // Predicated region
  $region22: #{conv_block_forward.1} parent=0 // pred_check
    _
  $region23: #{conv_block_forward.1} parent=0 // pred_check_branch
    %24 = sbr.rel (0) target = $region25
  $region24: #{conv_block_forward.1} parent=0 // pred_region
    _
  $region25: #{conv_block_forward.1} parent=0 // pred_fallthru
    _
  // Predicated region
  $region26: #{conv_block_forward.1} parent=0 // pred_check
    _
  $region27: #{conv_block_forward.1} parent=0 // pred_check_branch
    %26 = sbr.rel (0) target = $region29
  $region28: #{conv_block_forward.1} parent=0 // pred_region
    _
  $region29: #{conv_block_forward.1} parent=0 // pred_fallthru
    _
  // Predicated region
  $region30: #{conv_block_forward.1} parent=0 // pred_check
    _
  $region31: #{conv_block_forward.1} parent=0 // pred_check_branch
    %28 = sbr.rel (0) target = $region33
  $region32: #{conv_block_forward.1} parent=0 // pred_region
    _
  $region33: #{conv_block_forward.1} parent=0 // pred_fallthru
    _
  %v29 = vld [vmem:[%s1] ss:$4 sm:$0x3f]
  %v30 = vld [vmem:[%s0] sm:$0xff]
  %v31 = vld [vmem:[%s0 + $0x8] sm:$0xff]
  %v32 = vld [vmem:[%s0 + $0x10] sm:$0xff]
  %v33 = vld [vmem:[%s0 + $0x18] sm:$0xff]
  %v34 = vld [vmem:[%s0 + $0x20] sm:$0xff]
  %v35 = vld [vmem:[%s0 + $0x28] sm:$0xff]
  %36 = vst [vmem:[#allocation2] sm:$0xff] %v30
  %37 = vst [vmem:[#allocation2 + $0x8] sm:$0xff] %v31
  %38 = vst [vmem:[#allocation2 + $0x10] sm:$0xff] %v32
  %39 = vst [vmem:[#allocation2 + $0x18] sm:$0xff] %v33
  %40 = vst [vmem:[#allocation2 + $0x20] sm:$0xff] %v34
  %vm41 = vcmask 64512
  %42 = vst.msk [vmem:[#allocation2 + $0x28] sm:$0xff] %vm41, %v35
  %v43 = vld [vmem:[%s0] sm:$0xff]
  %v44 = vld [vmem:[%s0 + $0x8] sm:$0xff]
  %v45 = vld [vmem:[%s0 + $0x10] sm:$0xff]
  %v46 = vld [vmem:[%s0 + $0x18] sm:$0xff]
  %v47 = vld [vmem:[%s0 + $0x20] sm:$0xff]
  %v48 = vld [vmem:[%s0 + $0x28] sm:$0xff]
  %55 = vrot.lane.b32.xlu0 %v43, 127
  %v56 = vpop.permute.xlu0 %55
  %57 = vrot.lane.b32.xlu0 %v44, 127
  %v58 = vpop.permute.xlu0 %57
  %59 = vrot.lane.b32.xlu0 %v45, 127
  %v60 = vpop.permute.xlu0 %59
  %61 = vrot.lane.b32.xlu0 %v46, 127
  %v62 = vpop.permute.xlu0 %61
  %63 = vrot.lane.b32.xlu0 %v47, 127
  %v64 = vpop.permute.xlu0 %63
  %65 = vrot.lane.b32.xlu0 %v48, 127
  %v66 = vpop.permute.xlu0 %65
  %vm67 = vcmask 1039360
  %v68 = vsel %vm67, %v56, %v58
  %v69 = vsel %vm67, %v58, %v60
  %v70 = vsel %vm67, %v60, %v62
  %v71 = vsel %vm67, %v62, %v64
  %v72 = vsel %vm67, %v64, %v66
  %79 = vst [vmem:[#allocation2 + $0x30] sm:$0xff] %v68
  %80 = vst [vmem:[#allocation2 + $0x38] sm:$0xff] %v69
  %81 = vst [vmem:[#allocation2 + $0x40] sm:$0xff] %v70
  %82 = vst [vmem:[#allocation2 + $0x48] sm:$0xff] %v71
  %83 = vst [vmem:[#allocation2 + $0x50] sm:$0xff] %v72
  %84 = vst.msk [vmem:[#allocation2 + $0x58] sm:$0xff] %vm41, %v66
  %v85 = vld [vmem:[%s0] sm:$0xff]
  %v86 = vld [vmem:[%s0 + $0x8] sm:$0xff]
  %v87 = vld [vmem:[%s0 + $0x10] sm:$0xff]
  %v88 = vld [vmem:[%s0 + $0x18] sm:$0xff]
  %v89 = vld [vmem:[%s0 + $0x20] sm:$0xff]
  %v90 = vld [vmem:[%s0 + $0x28] sm:$0xff]
  %97 = vrot.lane.b32.xlu0 %v85, 126
  %v98 = vpop.permute.xlu0 %97
  %99 = vrot.lane.b32.xlu0 %v86, 126
  %v100 = vpop.permute.xlu0 %99
  %101 = vrot.lane.b32.xlu0 %v87, 126
  %v102 = vpop.permute.xlu0 %101
  %103 = vrot.lane.b32.xlu0 %v88, 126
  %v104 = vpop.permute.xlu0 %103
  %105 = vrot.lane.b32.xlu0 %v89, 126
  %v106 = vpop.permute.xlu0 %105
  %107 = vrot.lane.b32.xlu0 %v90, 126
  %v108 = vpop.permute.xlu0 %107
  %vm109 = vcmask 1031168
  %v110 = vsel %vm109, %v98, %v100
  %v111 = vsel %vm109, %v100, %v102
  %v112 = vsel %vm109, %v102, %v104
  %v113 = vsel %vm109, %v104, %v106
  %v114 = vsel %vm109, %v106, %v108
  %121 = vst [vmem:[#allocation2 + $0x60] sm:$0xff] %v110
  %122 = vst [vmem:[#allocation2 + $0x68] sm:$0xff] %v111
  %123 = vst [vmem:[#allocation2 + $0x70] sm:$0xff] %v112
  %124 = vst [vmem:[#allocation2 + $0x78] sm:$0xff] %v113
  %125 = vst [vmem:[#allocation2 + $0x80] sm:$0xff] %v114
  %126 = vst.msk [vmem:[#allocation2 + $0x88] sm:$0xff] %vm41, %v108
  %v127 = vld [vmem:[%s0] sm:$0xff]
  %v128 = vld [vmem:[%s0 + $0x8] sm:$0xff]
  %v129 = vld [vmem:[%s0 + $0x10] sm:$0xff]
  %v130 = vld [vmem:[%s0 + $0x18] sm:$0xff]
  %v131 = vld [vmem:[%s0 + $0x20] sm:$0xff]
  %v132 = vld [vmem:[%s0 + $0x28] sm:$0xff]
  %139 = vrot.lane.b32.xlu0 %v127, 110
  %v140 = vpop.permute.xlu0 %139
  %141 = vrot.lane.b32.xlu0 %v128, 110
  %v142 = vpop.permute.xlu0 %141
  %143 = vrot.lane.b32.xlu0 %v129, 110
  %v144 = vpop.permute.xlu0 %143
  %145 = vrot.lane.b32.xlu0 %v130, 110
  %v146 = vpop.permute.xlu0 %145
  %147 = vrot.lane.b32.xlu0 %v131, 110
  %v148 = vpop.permute.xlu0 %147
  %149 = vrot.lane.b32.xlu0 %v132, 110
  %v150 = vpop.permute.xlu0 %149
  %vm151 = vcmask 900096
  %v152 = vsel %vm151, %v140, %v142
  %v153 = vsel %vm151, %v142, %v144
  %v154 = vsel %vm151, %v144, %v146
  %v155 = vsel %vm151, %v146, %v148
  %v156 = vsel %vm151, %v148, %v150
  %163 = vst [vmem:[#allocation2 + $0x90] sm:$0xff] %v152
  %164 = vst [vmem:[#allocation2 + $0x98] sm:$0xff] %v153
  %165 = vst [vmem:[#allocation2 + $0xa0] sm:$0xff] %v154
  %166 = vst [vmem:[#allocation2 + $0xa8] sm:$0xff] %v155
  %167 = vst [vmem:[#allocation2 + $0xb0] sm:$0xff] %v156
  %168 = vst.msk [vmem:[#allocation2 + $0xb8] sm:$0xff] %vm41, %v150
  %v169 = vld [vmem:[%s0] sm:$0xff]
  %v170 = vld [vmem:[%s0 + $0x8] sm:$0xff]
  %v171 = vld [vmem:[%s0 + $0x10] sm:$0xff]
  %v172 = vld [vmem:[%s0 + $0x18] sm:$0xff]
  %v173 = vld [vmem:[%s0 + $0x20] sm:$0xff]
  %v174 = vld [vmem:[%s0 + $0x28] sm:$0xff]
  %181 = vrot.lane.b32.xlu0 %v169, 109
  %v182 = vpop.permute.xlu0 %181
  %183 = vrot.lane.b32.xlu0 %v170, 109
  %v184 = vpop.permute.xlu0 %183
  %185 = vrot.lane.b32.xlu0 %v171, 109
  %v186 = vpop.permute.xlu0 %185
  %187 = vrot.lane.b32.xlu0 %v172, 109
  %v188 = vpop.permute.xlu0 %187
  %189 = vrot.lane.b32.xlu0 %v173, 109
  %v190 = vpop.permute.xlu0 %189
  %191 = vrot.lane.b32.xlu0 %v174, 109
  %v192 = vpop.permute.xlu0 %191
  %vm193 = vcmask 891904
  %v194 = vsel %vm193, %v182, %v184
  %v195 = vsel %vm193, %v184, %v186
  %v196 = vsel %vm193, %v186, %v188
  %v197 = vsel %vm193, %v188, %v190
  %v198 = vsel %vm193, %v190, %v192
  %205 = vst [vmem:[#allocation2 + $0xc0] sm:$0xff] %v194
  %206 = vst [vmem:[#allocation2 + $0xc8] sm:$0xff] %v195
  %207 = vst [vmem:[#allocation2 + $0xd0] sm:$0xff] %v196
  %208 = vst [vmem:[#allocation2 + $0xd8] sm:$0xff] %v197
  %209 = vst [vmem:[#allocation2 + $0xe0] sm:$0xff] %v198
  %210 = vst.msk [vmem:[#allocation2 + $0xe8] sm:$0xff] %vm41, %v192
  %v211 = vld [vmem:[%s0] sm:$0xff]
  %v212 = vld [vmem:[%s0 + $0x8] sm:$0xff]
  %v213 = vld [vmem:[%s0 + $0x10] sm:$0xff]
  %v214 = vld [vmem:[%s0 + $0x18] sm:$0xff]
  %v215 = vld [vmem:[%s0 + $0x20] sm:$0xff]
  %v216 = vld [vmem:[%s0 + $0x28] sm:$0xff]
  %223 = vrot.lane.b32.xlu0 %v211, 108
  %v224 = vpop.permute.xlu0 %223
  %225 = vrot.lane.b32.xlu0 %v212, 108
  %v226 = vpop.permute.xlu0 %225
  %227 = vrot.lane.b32.xlu0 %v213, 108
  %v228 = vpop.permute.xlu0 %227
  %229 = vrot.lane.b32.xlu0 %v214, 108
  %v230 = vpop.permute.xlu0 %229
  %231 = vrot.lane.b32.xlu0 %v215, 108
  %v232 = vpop.permute.xlu0 %231
  %233 = vrot.lane.b32.xlu0 %v216, 108
  %v234 = vpop.permute.xlu0 %233
  %vm235 = vcmask 883712
  %v236 = vsel %vm235, %v224, %v226
  %v237 = vsel %vm235, %v226, %v228
  %v238 = vsel %vm235, %v228, %v230
  %v239 = vsel %vm235, %v230, %v232
  %v240 = vsel %vm235, %v232, %v234
  %247 = vst [vmem:[#allocation2 + $0xf0] sm:$0xff] %v236
  %248 = vst [vmem:[#allocation2 + $0xf8] sm:$0xff] %v237
  %249 = vst [vmem:[#allocation2 + $0x100] sm:$0xff] %v238
  %250 = vst [vmem:[#allocation2 + $0x108] sm:$0xff] %v239
  %251 = vst [vmem:[#allocation2 + $0x110] sm:$0xff] %v240
  %252 = vst.msk [vmem:[#allocation2 + $0x118] sm:$0xff] %vm41, %v234
  %v253 = vld [vmem:[%s0] sm:$0xff]
  %v254 = vld [vmem:[%s0 + $0x8] sm:$0xff]
  %v255 = vld [vmem:[%s0 + $0x10] sm:$0xff]
  %v256 = vld [vmem:[%s0 + $0x18] sm:$0xff]
  %v257 = vld [vmem:[%s0 + $0x20] sm:$0xff]
  %v258 = vld [vmem:[%s0 + $0x28] sm:$0xff]
  %265 = vrot.lane.b32.xlu0 %v253, 92
  %v266 = vpop.permute.xlu0 %265
  %267 = vrot.lane.b32.xlu0 %v254, 92
  %v268 = vpop.permute.xlu0 %267
  %269 = vrot.lane.b32.xlu0 %v255, 92
  %v270 = vpop.permute.xlu0 %269
  %271 = vrot.lane.b32.xlu0 %v256, 92
  %v272 = vpop.permute.xlu0 %271
  %273 = vrot.lane.b32.xlu0 %v257, 92
  %v274 = vpop.permute.xlu0 %273
  %275 = vrot.lane.b32.xlu0 %v258, 92
  %v276 = vpop.permute.xlu0 %275
  %vm277 = vcmask 752640
  %v278 = vsel %vm277, %v266, %v268
  %v279 = vsel %vm277, %v268, %v270
  %v280 = vsel %vm277, %v270, %v272
  %v281 = vsel %vm277, %v272, %v274
  %v282 = vsel %vm277, %v274, %v276
  %289 = vst [vmem:[#allocation2 + $0x120] sm:$0xff] %v278
  %290 = vst [vmem:[#allocation2 + $0x128] sm:$0xff] %v279
  %291 = vst [vmem:[#allocation2 + $0x130] sm:$0xff] %v280
  %292 = vst [vmem:[#allocation2 + $0x138] sm:$0xff] %v281
  %293 = vst [vmem:[#allocation2 + $0x140] sm:$0xff] %v282
  %294 = vst.msk [vmem:[#allocation2 + $0x148] sm:$0xff] %vm41, %v276
  %v295 = vld [vmem:[%s0] sm:$0xff]
  %v296 = vld [vmem:[%s0 + $0x8] sm:$0xff]
  %v297 = vld [vmem:[%s0 + $0x10] sm:$0xff]
  %v298 = vld [vmem:[%s0 + $0x18] sm:$0xff]
  %v299 = vld [vmem:[%s0 + $0x20] sm:$0xff]
  %v300 = vld [vmem:[%s0 + $0x28] sm:$0xff]
  %307 = vrot.lane.b32.xlu0 %v295, 91
  %v308 = vpop.permute.xlu0 %307
  %309 = vrot.lane.b32.xlu0 %v296, 91
  %v310 = vpop.permute.xlu0 %309
  %311 = vrot.lane.b32.xlu0 %v297, 91
  %v312 = vpop.permute.xlu0 %311
  %313 = vrot.lane.b32.xlu0 %v298, 91
  %v314 = vpop.permute.xlu0 %313
  %315 = vrot.lane.b32.xlu0 %v299, 91
  %v316 = vpop.permute.xlu0 %315
  %317 = vrot.lane.b32.xlu0 %v300, 91
  %v318 = vpop.permute.xlu0 %317
  %vm319 = vcmask 744448
  %v320 = vsel %vm319, %v308, %v310
  %v321 = vsel %vm319, %v310, %v312
  %v322 = vsel %vm319, %v312, %v314
  %v323 = vsel %vm319, %v314, %v316
  %v324 = vsel %vm319, %v316, %v318
  %331 = vst [vmem:[#allocation2 + $0x150] sm:$0xff] %v320
  %332 = vst [vmem:[#allocation2 + $0x158] sm:$0xff] %v321
  %333 = vst [vmem:[#allocation2 + $0x160] sm:$0xff] %v322
  %334 = vst [vmem:[#allocation2 + $0x168] sm:$0xff] %v323
  %335 = vst [vmem:[#allocation2 + $0x170] sm:$0xff] %v324
  %336 = vst.msk [vmem:[#allocation2 + $0x178] sm:$0xff] %vm41, %v318
  %v337 = vld [vmem:[%s0] sm:$0xff]
  %v338 = vld [vmem:[%s0 + $0x8] sm:$0xff]
  %v339 = vld [vmem:[%s0 + $0x10] sm:$0xff]
  %v340 = vld [vmem:[%s0 + $0x18] sm:$0xff]
  %v341 = vld [vmem:[%s0 + $0x20] sm:$0xff]
  %v342 = vld [vmem:[%s0 + $0x28] sm:$0xff]
  %349 = vrot.lane.b32.xlu0 %v337, 90
  %v350 = vpop.permute.xlu0 %349
  %351 = vrot.lane.b32.xlu0 %v338, 90
  %v352 = vpop.permute.xlu0 %351
  %353 = vrot.lane.b32.xlu0 %v339, 90
  %v354 = vpop.permute.xlu0 %353
  %355 = vrot.lane.b32.xlu0 %v340, 90
  %v356 = vpop.permute.xlu0 %355
  %357 = vrot.lane.b32.xlu0 %v341, 90
  %v358 = vpop.permute.xlu0 %357
  %359 = vrot.lane.b32.xlu0 %v342, 90
  %v360 = vpop.permute.xlu0 %359
  %vm361 = vcmask 736256
  %v362 = vsel %vm361, %v350, %v352
  %v363 = vsel %vm361, %v352, %v354
  %v364 = vsel %vm361, %v354, %v356
  %v365 = vsel %vm361, %v356, %v358
  %v366 = vsel %vm361, %v358, %v360
  %373 = vst [vmem:[#allocation2 + $0x180] sm:$0xff] %v362
  %374 = vst [vmem:[#allocation2 + $0x188] sm:$0xff] %v363
  %375 = vst [vmem:[#allocation2 + $0x190] sm:$0xff] %v364
  %376 = vst [vmem:[#allocation2 + $0x198] sm:$0xff] %v365
  %377 = vst [vmem:[#allocation2 + $0x1a0] sm:$0xff] %v366
  %378 = vst.msk [vmem:[#allocation2 + $0x1a8] sm:$0xff] %vm41, %v360
  %v379 = vld [vmem:[%s2] sm:$0xff]
  %v380 = vld [vmem:[#allocation2] sm:$0xff]
  %v381 = vld [vmem:[#allocation2 + $0x8] sm:$0xff]
  %v382 = vld [vmem:[#allocation2 + $0x10] sm:$0xff]
  %v383 = vld [vmem:[#allocation2 + $0x18] sm:$0xff]
  %v384 = vld [vmem:[#allocation2 + $0x20] sm:$0xff]
  %v385 = vld [vmem:[#allocation2 + $0x28] sm:$0xff]
  %v386 = vld [vmem:[#allocation2 + $0x30] sm:$0xff]
  %v387 = vld [vmem:[#allocation2 + $0x38] sm:$0xff]
  %v388 = vld [vmem:[#allocation2 + $0x40] sm:$0xff]
  %v389 = vld [vmem:[#allocation2 + $0x48] sm:$0xff]
  %v390 = vld [vmem:[#allocation2 + $0x50] sm:$0xff]
  %v391 = vld [vmem:[#allocation2 + $0x58] sm:$0xff]
  %v392 = vld [vmem:[#allocation2 + $0x60] sm:$0xff]
  %v393 = vld [vmem:[#allocation2 + $0x68] sm:$0xff]
  %v394 = vld [vmem:[#allocation2 + $0x70] sm:$0xff]
  %v395 = vld [vmem:[#allocation2 + $0x78] sm:$0xff]
  %v396 = vld [vmem:[#allocation2 + $0x80] sm:$0xff]
  %v397 = vld [vmem:[#allocation2 + $0x88] sm:$0xff]
  %v398 = vld [vmem:[#allocation2 + $0x90] sm:$0xff]
  %v399 = vld [vmem:[#allocation2 + $0x98] sm:$0xff]
  %v400 = vld [vmem:[#allocation2 + $0xa0] sm:$0xff]
  %v401 = vld [vmem:[#allocation2 + $0xa8] sm:$0xff]
  %v402 = vld [vmem:[#allocation2 + $0xb0] sm:$0xff]
  %v403 = vld [vmem:[#allocation2 + $0xb8] sm:$0xff]
  %v404 = vld [vmem:[#allocation2 + $0xc0] sm:$0xff]
  %v405 = vld [vmem:[#allocation2 + $0xc8] sm:$0xff]
  %v406 = vld [vmem:[#allocation2 + $0xd0] sm:$0xff]
  %v407 = vld [vmem:[#allocation2 + $0xd8] sm:$0xff]
  %v408 = vld [vmem:[#allocation2 + $0xe0] sm:$0xff]
  %v409 = vld [vmem:[#allocation2 + $0xe8] sm:$0xff]
  %v410 = vld [vmem:[#allocation2 + $0xf0] sm:$0xff]
  %v411 = vld [vmem:[#allocation2 + $0xf8] sm:$0xff]
  %v412 = vld [vmem:[#allocation2 + $0x100] sm:$0xff]
  %v413 = vld [vmem:[#allocation2 + $0x108] sm:$0xff]
  %v414 = vld [vmem:[#allocation2 + $0x110] sm:$0xff]
  %v415 = vld [vmem:[#allocation2 + $0x118] sm:$0xff]
  %v416 = vld [vmem:[#allocation2 + $0x120] sm:$0xff]
  %v417 = vld [vmem:[#allocation2 + $0x128] sm:$0xff]
  %v418 = vld [vmem:[#allocation2 + $0x130] sm:$0xff]
  %v419 = vld [vmem:[#allocation2 + $0x138] sm:$0xff]
  %v420 = vld [vmem:[#allocation2 + $0x140] sm:$0xff]
  %v421 = vld [vmem:[#allocation2 + $0x148] sm:$0xff]
  %v422 = vld [vmem:[#allocation2 + $0x150] sm:$0xff]
  %v423 = vld [vmem:[#allocation2 + $0x158] sm:$0xff]
  %v424 = vld [vmem:[#allocation2 + $0x160] sm:$0xff]
  %v425 = vld [vmem:[#allocation2 + $0x168] sm:$0xff]
  %v426 = vld [vmem:[#allocation2 + $0x170] sm:$0xff]
  %v427 = vld [vmem:[#allocation2 + $0x178] sm:$0xff]
  %v428 = vld [vmem:[#allocation2 + $0x180] sm:$0xff]
  %v429 = vld [vmem:[#allocation2 + $0x188] sm:$0xff]
  %v430 = vld [vmem:[#allocation2 + $0x190] sm:$0xff]
  %v431 = vld [vmem:[#allocation2 + $0x198] sm:$0xff]
  %v432 = vld [vmem:[#allocation2 + $0x1a0] sm:$0xff]
  %v433 = vld [vmem:[#allocation2 + $0x1a8] sm:$0xff]
  %vm434 = vcmask 588800
  %v436 = vsel %vm434, %v379, 0
  %438 = vmatprep.subr.mxu0 %v381
  %439 = vmatpush1.msra.mxu0 %v380
  %440 = vmatprep.subr.mxu0 %v387
  %441 = vmatpush1.msra.mxu0 %v386
  %442 = vmatprep.subr.mxu0 %v393
  %443 = vmatpush1.msra.mxu0 %v392
  %444 = vmatprep.subr.mxu0 %v399
  %445 = vmatpush1.msra.mxu0 %v398
  %446 = vmatprep.subr.mxu0 %v405
  %447 = vmatpush1.msra.mxu0 %v404
  %448 = vmatprep.subr.mxu0 %v411
  %449 = vmatpush1.msra.mxu0 %v410
  %450 = vmatprep.subr.mxu0 %v417
  %451 = vmatpush1.msra.mxu0 %v416
  %452 = vmatprep.subr.mxu0 %v423
  %453 = vmatpush1.msra.mxu0 %v422
  %454 = vmatprep.subr.mxu0 %v429
  %455 = vmatpush1.msra.mxu0 %v428
  %456 = vmatprep.subr.mxu0 0.0
  %457 = vmatpush1.msra.mxu0 0.0
  %458 = vmatprep.subr.mxu0 0.0
  %459 = vmatpush1.msra.mxu0 0.0
  %460 = vmatprep.subr.mxu0 0.0
  %461 = vmatpush1.msra.mxu0 0.0
  %462 = vmatprep.subr.mxu0 0.0
  %463 = vmatpush1.msra.mxu0 0.0
  %464 = vmatprep.subr.mxu0 0.0
  %465 = vmatpush1.msra.mxu0 0.0
  %466 = vmatprep.subr.mxu0 0.0
  %467 = vmatpush1.msra.mxu0 0.0
  %468 = vmatprep.subr.mxu0 0.0
  %469 = vmatpush1.msra.mxu0 0.0
  %470 = vmatprep.subr.mxu0 0.0
  %471 = vmatpush1.msra.mxu0 0.0
  %472 = vmatprep.subr.mxu0 0.0
  %473 = vmatpush1.msra.mxu0 0.0
  %474 = vmatprep.subr.mxu0 0.0
  %475 = vmatpush1.msra.mxu0 0.0
  %476 = vmatprep.subr.mxu0 0.0
  %477 = vmatpush1.msra.mxu0 0.0
  %478 = vmatprep.subr.mxu0 0.0
  %479 = vmatpush1.msra.mxu0 0.0
  %480 = vmatprep.subr.mxu0 0.0
  %481 = vmatpush1.msra.mxu0 0.0
  %482 = vmatprep.subr.mxu0 0.0
  %483 = vmatpush1.msra.mxu0 0.0
  %484 = vmatprep.subr.mxu0 0.0
  %485 = vmatpush1.msra.mxu0 0.0
  %486 = vmatprep.subr.mxu0 0.0
  %487 = vmatpush1.msra.mxu0 0.0
  %488 = vmatprep.subr.mxu0 0.0
  %489 = vmatpush1.msra.mxu0 0.0
  %490 = vmatprep.subr.mxu0 0.0
  %491 = vmatpush1.msra.mxu0 0.0
  %492 = vmatprep.subr.mxu0 0.0
  %493 = vmatpush1.msra.mxu0 0.0
  %494 = vmatprep.subr.mxu0 0.0
  %495 = vmatpush1.msra.mxu0 0.0
  %496 = vmatprep.subr.mxu0 0.0
  %497 = vmatpush1.msra.mxu0 0.0
  %498 = vmatprep.subr.mxu0 0.0
  %499 = vmatpush1.msra.mxu0 0.0
  %500 = vmatprep.subr.mxu0 0.0
  %501 = vmatpush1.msra.mxu0 0.0
  %502 = vmatprep.mubr.f32.mxu0 0.0
  %503 = vmatmul.mubr.f32.gmra.mrb[0].mxu0 %v436
  %v504 = vpop.f32.mrb[0].mxu0
  %v505 = vadd.f32 0.0, %v504
  %v506 = vpop.f32.mrb[0].mxu0
  %v507 = vadd.f32 0.0, %v506
  %508 = vdwg.mxu0
  %509 = vmatprep.subr.mxu0 %v383
  %510 = vmatpush1.msra.mxu0 %v382
  %511 = vmatprep.subr.mxu0 %v389
  %512 = vmatpush1.msra.mxu0 %v388
  %513 = vmatprep.subr.mxu0 %v395
  %514 = vmatpush1.msra.mxu0 %v394
  %515 = vmatprep.subr.mxu0 %v401
  %516 = vmatpush1.msra.mxu0 %v400
  %517 = vmatprep.subr.mxu0 %v407
  %518 = vmatpush1.msra.mxu0 %v406
  %519 = vmatprep.subr.mxu0 %v413
  %520 = vmatpush1.msra.mxu0 %v412
  %521 = vmatprep.subr.mxu0 %v419
  %522 = vmatpush1.msra.mxu0 %v418
  %523 = vmatprep.subr.mxu0 %v425
  %524 = vmatpush1.msra.mxu0 %v424
  %525 = vmatprep.subr.mxu0 %v431
  %526 = vmatpush1.msra.mxu0 %v430
  %527 = vmatprep.subr.mxu0 0.0
  %528 = vmatpush1.msra.mxu0 0.0
  %529 = vmatprep.subr.mxu0 0.0
  %530 = vmatpush1.msra.mxu0 0.0
  %531 = vmatprep.subr.mxu0 0.0
  %532 = vmatpush1.msra.mxu0 0.0
  %533 = vmatprep.subr.mxu0 0.0
  %534 = vmatpush1.msra.mxu0 0.0
  %535 = vmatprep.subr.mxu0 0.0
  %536 = vmatpush1.msra.mxu0 0.0
  %537 = vmatprep.subr.mxu0 0.0
  %538 = vmatpush1.msra.mxu0 0.0
  %539 = vmatprep.subr.mxu0 0.0
  %540 = vmatpush1.msra.mxu0 0.0
  %541 = vmatprep.subr.mxu0 0.0
  %542 = vmatpush1.msra.mxu0 0.0
  %543 = vmatprep.subr.mxu0 0.0
  %544 = vmatpush1.msra.mxu0 0.0
  %545 = vmatprep.subr.mxu0 0.0
  %546 = vmatpush1.msra.mxu0 0.0
  %547 = vmatprep.subr.mxu0 0.0
  %548 = vmatpush1.msra.mxu0 0.0
  %549 = vmatprep.subr.mxu0 0.0
  %550 = vmatpush1.msra.mxu0 0.0
  %551 = vmatprep.subr.mxu0 0.0
  %552 = vmatpush1.msra.mxu0 0.0
  %553 = vmatprep.subr.mxu0 0.0
  %554 = vmatpush1.msra.mxu0 0.0
  %555 = vmatprep.subr.mxu0 0.0
  %556 = vmatpush1.msra.mxu0 0.0
  %557 = vmatprep.subr.mxu0 0.0
  %558 = vmatpush1.msra.mxu0 0.0
  %559 = vmatprep.subr.mxu0 0.0
  %560 = vmatpush1.msra.mxu0 0.0
  %561 = vmatprep.subr.mxu0 0.0
  %562 = vmatpush1.msra.mxu0 0.0
  %563 = vmatprep.subr.mxu0 0.0
  %564 = vmatpush1.msra.mxu0 0.0
  %565 = vmatprep.subr.mxu0 0.0
  %566 = vmatpush1.msra.mxu0 0.0
  %567 = vmatprep.subr.mxu0 0.0
  %568 = vmatpush1.msra.mxu0 0.0
  %569 = vmatprep.subr.mxu0 0.0
  %570 = vmatpush1.msra.mxu0 0.0
  %571 = vmatprep.subr.mxu0 0.0
  %572 = vmatpush1.msra.mxu0 0.0
  %573 = vmatprep.mubr.f32.mxu0 0.0
  %574 = vmatmul.mubr.f32.gmra.mrb[0].mxu0 %v436
  %v575 = vpop.f32.mrb[0].mxu0
  %v576 = vadd.f32 0.0, %v575
  %v577 = vpop.f32.mrb[0].mxu0
  %v578 = vadd.f32 0.0, %v577
  %579 = vdwg.mxu0
  %580 = vmatprep.subr.mxu0 %v385
  %581 = vmatpush1.msra.mxu0 %v384
  %582 = vmatprep.subr.mxu0 %v391
  %583 = vmatpush1.msra.mxu0 %v390
  %584 = vmatprep.subr.mxu0 %v397
  %585 = vmatpush1.msra.mxu0 %v396
  %586 = vmatprep.subr.mxu0 %v403
  %587 = vmatpush1.msra.mxu0 %v402
  %588 = vmatprep.subr.mxu0 %v409
  %589 = vmatpush1.msra.mxu0 %v408
  %590 = vmatprep.subr.mxu0 %v415
  %591 = vmatpush1.msra.mxu0 %v414
  %592 = vmatprep.subr.mxu0 %v421
  %593 = vmatpush1.msra.mxu0 %v420
  %594 = vmatprep.subr.mxu0 %v427
  %595 = vmatpush1.msra.mxu0 %v426
  %596 = vmatprep.subr.mxu0 %v433
  %597 = vmatpush1.msra.mxu0 %v432
  %598 = vmatprep.subr.mxu0 0.0
  %599 = vmatpush1.msra.mxu0 0.0
  %600 = vmatprep.subr.mxu0 0.0
  %601 = vmatpush1.msra.mxu0 0.0
  %602 = vmatprep.subr.mxu0 0.0
  %603 = vmatpush1.msra.mxu0 0.0
  %604 = vmatprep.subr.mxu0 0.0
  %605 = vmatpush1.msra.mxu0 0.0
  %606 = vmatprep.subr.mxu0 0.0
  %607 = vmatpush1.msra.mxu0 0.0
  %608 = vmatprep.subr.mxu0 0.0
  %609 = vmatpush1.msra.mxu0 0.0
  %610 = vmatprep.subr.mxu0 0.0
  %611 = vmatpush1.msra.mxu0 0.0
  %612 = vmatprep.subr.mxu0 0.0
  %613 = vmatpush1.msra.mxu0 0.0
  %614 = vmatprep.subr.mxu0 0.0
  %615 = vmatpush1.msra.mxu0 0.0
  %616 = vmatprep.subr.mxu0 0.0
  %617 = vmatpush1.msra.mxu0 0.0
  %618 = vmatprep.subr.mxu0 0.0
  %619 = vmatpush1.msra.mxu0 0.0
  %620 = vmatprep.subr.mxu0 0.0
  %621 = vmatpush1.msra.mxu0 0.0
  %622 = vmatprep.subr.mxu0 0.0
  %623 = vmatpush1.msra.mxu0 0.0
  %624 = vmatprep.subr.mxu0 0.0
  %625 = vmatpush1.msra.mxu0 0.0
  %626 = vmatprep.subr.mxu0 0.0
  %627 = vmatpush1.msra.mxu0 0.0
  %628 = vmatprep.subr.mxu0 0.0
  %629 = vmatpush1.msra.mxu0 0.0
  %630 = vmatprep.subr.mxu0 0.0
  %631 = vmatpush1.msra.mxu0 0.0
  %632 = vmatprep.subr.mxu0 0.0
  %633 = vmatpush1.msra.mxu0 0.0
  %634 = vmatprep.subr.mxu0 0.0
  %635 = vmatpush1.msra.mxu0 0.0
  %636 = vmatprep.subr.mxu0 0.0
  %637 = vmatpush1.msra.mxu0 0.0
  %638 = vmatprep.subr.mxu0 0.0
  %639 = vmatpush1.msra.mxu0 0.0
  %640 = vmatprep.subr.mxu0 0.0
  %641 = vmatpush1.msra.mxu0 0.0
  %642 = vmatprep.subr.mxu0 0.0
  %643 = vmatpush1.msra.mxu0 0.0
  %644 = vmatprep.mubr.f32.mxu0 0.0
  %645 = vmatmul.mubr.f32.gmra.mrb[0].mxu0 %v436
  %v646 = vpop.f32.mrb[0].mxu0
  %v647 = vadd.f32 0.0, %v646
  %v648 = vpop.f32.mrb[0].mxu0
  %v649 = vadd.f32 0.0, %v648
  %650 = vdwg.mxu0
  %v652 = vlaneseq
  %v653 = vshrl.u32 %v652, 7
  %v654 = vsub.s32 0, %v653
  %v655 = vrot.slane %v29, %v654
  %v656 = vlaneseq
  %v657 = vshrl.u32 %v656, 7
  %v658 = vsub.s32 1, %v657
  %v659 = vrot.slane %v29, %v658
  %v660 = vlaneseq
  %v661 = vshrl.u32 %v660, 7
  %v662 = vsub.s32 2, %v661
  %v663 = vrot.slane %v29, %v662
  %v664 = vlaneseq
  %v665 = vshrl.u32 %v664, 7
  %v666 = vsub.s32 3, %v665
  %v667 = vrot.slane %v29, %v666
  %v668 = vlaneseq
  %v669 = vshrl.u32 %v668, 7
  %v670 = vsub.s32 4, %v669
  %v671 = vrot.slane %v29, %v670
  %v672 = vlaneseq
  %v673 = vshrl.u32 %v672, 7
  %v674 = vsub.s32 5, %v673
  %v675 = vrot.slane %v29, %v674
  %v682 = vmul.f32 %v505, %v655
  %v683 = vmul.f32 %v507, %v659
  %v684 = vmul.f32 %v576, %v663
  %v685 = vmul.f32 %v578, %v667
  %v686 = vmul.f32 %v647, %v671
  %v687 = vmul.f32 %v649, %v675
  %v688 = vadd.f32 %v682, %v683
  %v689 = vadd.f32 %v688, %v684
  %v690 = vadd.f32 %v689, %v685
  %v691 = vadd.f32 %v690, %v686
  %v692 = vsel %vm41, %v687, 0.0
  %v693 = vadd.f32 %v691, %v692
  %694 = vadd.xlane.f32.xlu0 %v693
  %v695 = vpop.xlane.xlu0 %694
  %v696 = vmul.f32 %v695, 0.001953125
  %v697 = vsub.f32 %v505, %v696
  %v698 = vsub.f32 %v507, %v696
  %v699 = vsub.f32 %v576, %v696
  %v700 = vsub.f32 %v578, %v696
  %v701 = vsub.f32 %v647, %v696
  %v702 = vsub.f32 %v649, %v696
  %v703 = vmul.f32 %v697, %v697
  %v704 = vmul.f32 %v698, %v698
  %v705 = vmul.f32 %v699, %v699
  %v706 = vmul.f32 %v700, %v700
  %v707 = vmul.f32 %v701, %v701
  %v708 = vmul.f32 %v702, %v702
  %v709 = vmul.f32 %v703, %v655
  %v710 = vmul.f32 %v704, %v659
  %v711 = vmul.f32 %v705, %v663
  %v712 = vmul.f32 %v706, %v667
  %v713 = vmul.f32 %v707, %v671
  %v714 = vmul.f32 %v708, %v675
  %v715 = vadd.f32 %v709, %v710
  %v716 = vadd.f32 %v715, %v711
  %v717 = vadd.f32 %v716, %v712
  %v718 = vadd.f32 %v717, %v713
  %v719 = vsel %vm41, %v714, 0.0
  %v720 = vadd.f32 %v718, %v719
  %721 = vadd.xlane.f32.xlu0 %v720
  %v722 = vpop.xlane.xlu0 %721
  %v723 = vmul.f32 %v722, 0.001953125
  %v724 = vld [vmem:[%s3] sm:$0xff]
  %v725 = vadd.f32 %v723, 1e-05
  %v726 = vrsqrt.pop %v725
  %v727 = vmul.f32 %v724, %v726
  %v728 = vld [vmem:[%s4] sm:$0xff]
  %v729 = vmul.f32 %v696, %v727
  %v730 = vsub.f32 %v728, %v729
  %732 = vset.pattern.permute.xlu0 0
  %733 = vperm.xlu0 %732, %v727
  %v734 = vpop.permute.xlu0 %733
  %v736 = vmul.f32 %v505, %v734
  %v737 = vmul.f32 %v507, %v734
  %v738 = vmul.f32 %v576, %v734
  %v739 = vmul.f32 %v578, %v734
  %v740 = vmul.f32 %v647, %v734
  %v741 = vmul.f32 %v649, %v734
  %743 = vset.pattern.permute.xlu0 0
  %744 = vperm.xlu0 %743, %v730
  %v745 = vpop.permute.xlu0 %744
  %v747 = vadd.f32 %v736, %v745
  %v748 = vadd.f32 %v737, %v745
  %v749 = vadd.f32 %v738, %v745
  %v750 = vadd.f32 %v739, %v745
  %v751 = vadd.f32 %v740, %v745
  %v752 = vadd.f32 %v741, %v745
  %v753 = vmax.f32 %v747, 0.0
  %v754 = vmax.f32 %v748, 0.0
  %v755 = vmax.f32 %v749, 0.0
  %v756 = vmax.f32 %v750, 0.0
  %v757 = vmax.f32 %v751, 0.0
  %v758 = vmax.f32 %v752, 0.0
  %vm759 = vcmask 154624
  %760 = vst.msk [vmem:[#allocation3] sm:$0xff] %vm759, 0.0
  %vm761 = vcmask 376024
  %762 = vst.msk [vmem:[#allocation3 + $0x28] sm:$0xff] %vm761, 0.0
  %769 = vrot.lane.b32.xlu0 %v753, 19
  %v770 = vpop.permute.xlu0 %769
  %771 = vrot.lane.b32.xlu0 %v754, 19
  %v772 = vpop.permute.xlu0 %771
  %773 = vrot.lane.b32.xlu0 %v755, 19
  %v774 = vpop.permute.xlu0 %773
  %775 = vrot.lane.b32.xlu0 %v756, 19
  %v776 = vpop.permute.xlu0 %775
  %777 = vrot.lane.b32.xlu0 %v757, 19
  %v778 = vpop.permute.xlu0 %777
  %779 = vrot.lane.b32.xlu0 %v758, 19
  %v780 = vpop.permute.xlu0 %779
  %v781 = vsel %vm759, %v770, %v772
  %v782 = vsel %vm759, %v772, %v774
  %v783 = vsel %vm759, %v774, %v776
  %v784 = vsel %vm759, %v776, %v778
  %v785 = vsel %vm759, %v778, %v780
  %vm792 = vcmask 1047704
  %793 = vst.msk [vmem:[#allocation3] sm:$0xff] %vm792, %v770
  %794 = vst [vmem:[#allocation3 + $0x8] sm:$0xff] %v781
  %795 = vst [vmem:[#allocation3 + $0x10] sm:$0xff] %v782
  %796 = vst [vmem:[#allocation3 + $0x18] sm:$0xff] %v783
  %797 = vst [vmem:[#allocation3 + $0x20] sm:$0xff] %v784
  %vm798 = vcmask 220160
  %799 = vst.msk [vmem:[#allocation3 + $0x28] sm:$0xff] %vm798, %v785
  %800 = vrot.lane.b32.xlu0 %v753, 111
  %v801 = vpop.permute.xlu0 %800
  %vm803 = vcmask 302232
  %804 = vst.msk [vmem:[#allocation3] sm:$0xff] %vm803, %v801
  %805 = vrot.lane.b32.xlu0 %v755, 55
  %v806 = vpop.permute.xlu0 %805
  %vm808 = vcmask 712232
  %809 = vst.msk [vmem:[#allocation3 + $0x10] sm:$0xff] %vm808, %v806
  %810 = vrot.lane.b32.xlu0 %v755, 111
  %v811 = vpop.permute.xlu0 %810
  %vm813 = vcmask 859832
  %814 = vst.msk [vmem:[#allocation3 + $0x10] sm:$0xff] %vm813, %v811
  %815 = vrot.lane.b32.xlu0 %v757, 55
  %v816 = vpop.permute.xlu0 %815
  %vm818 = vcmask 220232
  %819 = vst.msk [vmem:[#allocation3 + $0x28] sm:$0xff] %vm818, %v816
  %v820 = vld [vmem:[#allocation3] sm:$0xff]
  %v821 = vld [vmem:[#allocation3 + $0x8] sm:$0xff]
  %v822 = vld [vmem:[#allocation3 + $0x10] sm:$0xff]
  %v823 = vld [vmem:[#allocation3 + $0x18] sm:$0xff]
  %v824 = vld [vmem:[#allocation3 + $0x20] sm:$0xff]
  %v825 = vld [vmem:[#allocation3 + $0x28] sm:$0xff]
  %s826 = scalar_lea.vmem %s1, 1
  %v827 = vld [vmem:[%s826] ss:$4 sm:$0x3f]
  %vm828 = vcmp.gt.f32.partialorder %v827, 0.5
  %s829 = scalar_lea.vmem %s1, 2
  %v830 = vld [vmem:[%s829] ss:$4 sm:$0x3f]
  %vm831 = vcmp.gt.f32.partialorder %v830, 0.5
  %v832 = vsel %vm831, 1, 0
  %v833 = vlaneseq
  %v834 = vshrl.u32 %v833, 7
  %v835 = vsub.s32 0, %v834
  %v836 = vrot.slane %v832, %v835
  %v837 = vlaneseq
  %v838 = vshrl.u32 %v837, 7
  %v839 = vsub.s32 1, %v838
  %v840 = vrot.slane %v832, %v839
  %v841 = vlaneseq
  %v842 = vshrl.u32 %v841, 7
  %v843 = vsub.s32 2, %v842
  %v844 = vrot.slane %v832, %v843
  %v845 = vlaneseq
  %v846 = vshrl.u32 %v845, 7
  %v847 = vsub.s32 3, %v846
  %v848 = vrot.slane %v832, %v847
  %v849 = vlaneseq
  %v850 = vshrl.u32 %v849, 7
  %v851 = vsub.s32 4, %v850
  %v852 = vrot.slane %v832, %v851
  %v853 = vlaneseq
  %v854 = vshrl.u32 %v853, 7
  %v855 = vsub.s32 5, %v854
  %v856 = vrot.slane %v832, %v855
  %vm857 = vcmp.eq.s32.totalorder %v836, 1
  %vm858 = vcmp.eq.s32.totalorder %v840, 1
  %vm859 = vcmp.eq.s32.totalorder %v844, 1
  %vm860 = vcmp.eq.s32.totalorder %v848, 1
  %vm861 = vcmp.eq.s32.totalorder %v852, 1
  %vm862 = vcmp.eq.s32.totalorder %v856, 1
  %869 = vrot.lane.b32.xlu0 %v820, 111
  %v870 = vpop.permute.xlu0 %869
  %871 = vrot.lane.b32.xlu0 %v821, 111
  %v872 = vpop.permute.xlu0 %871
  %873 = vrot.lane.b32.xlu0 %v822, 111
  %v874 = vpop.permute.xlu0 %873
  %875 = vrot.lane.b32.xlu0 %v823, 111
  %v876 = vpop.permute.xlu0 %875
  %877 = vrot.lane.b32.xlu0 %v824, 111
  %v878 = vpop.permute.xlu0 %877
  %879 = vrot.lane.b32.xlu0 %v825, 111
  %v880 = vpop.permute.xlu0 %879
  %vm881 = vcmask 908288
  %v882 = vsel %vm881, %v870, %v872
  %v883 = vsel %vm881, %v872, %v874
  %v884 = vsel %vm881, %v874, %v876
  %v885 = vsel %vm881, %v876, %v878
  %v886 = vsel %vm881, %v878, %v880
  %893 = vrot.lane.b32.xlu0 %v820, 109
  %v894 = vpop.permute.xlu0 %893
  %895 = vrot.lane.b32.xlu0 %v821, 109
  %v896 = vpop.permute.xlu0 %895
  %897 = vrot.lane.b32.xlu0 %v822, 109
  %v898 = vpop.permute.xlu0 %897
  %899 = vrot.lane.b32.xlu0 %v823, 109
  %v900 = vpop.permute.xlu0 %899
  %901 = vrot.lane.b32.xlu0 %v824, 109
  %v902 = vpop.permute.xlu0 %901
  %903 = vrot.lane.b32.xlu0 %v825, 109
  %v904 = vpop.permute.xlu0 %903
  %v905 = vsel %vm193, %v894, %v896
  %v906 = vsel %vm193, %v896, %v898
  %v907 = vsel %vm193, %v898, %v900
  %v908 = vsel %vm193, %v900, %v902
  %v909 = vsel %vm193, %v902, %v904
  %v916 = vsel %vm857, %v882, %v905
  %v917 = vsel %vm858, %v883, %v906
  %v918 = vsel %vm859, %v884, %v907
  %v919 = vsel %vm860, %v885, %v908
  %v920 = vsel %vm861, %v886, %v909
  %v921 = vsel %vm862, %v880, %v904
  %v922 = vsel %vm828, 1, 0
  %v923 = vlaneseq
  %v924 = vshrl.u32 %v923, 7
  %v925 = vsub.s32 0, %v924
  %v926 = vrot.slane %v922, %v925
  %v927 = vlaneseq
  %v928 = vshrl.u32 %v927, 7
  %v929 = vsub.s32 1, %v928
  %v930 = vrot.slane %v922, %v929
  %v931 = vlaneseq
  %v932 = vshrl.u32 %v931, 7
  %v933 = vsub.s32 2, %v932
  %v934 = vrot.slane %v922, %v933
  %v935 = vlaneseq
  %v936 = vshrl.u32 %v935, 7
  %v937 = vsub.s32 3, %v936
  %v938 = vrot.slane %v922, %v937
  %v939 = vlaneseq
  %v940 = vshrl.u32 %v939, 7
  %v941 = vsub.s32 4, %v940
  %v942 = vrot.slane %v922, %v941
  %v943 = vlaneseq
  %v944 = vshrl.u32 %v943, 7
  %v945 = vsub.s32 5, %v944
  %v946 = vrot.slane %v922, %v945
  %vm947 = vcmp.eq.s32.totalorder %v926, 1
  %vm948 = vcmp.eq.s32.totalorder %v930, 1
  %vm949 = vcmp.eq.s32.totalorder %v934, 1
  %vm950 = vcmp.eq.s32.totalorder %v938, 1
  %vm951 = vcmp.eq.s32.totalorder %v942, 1
  %vm952 = vcmp.eq.s32.totalorder %v946, 1
  %953 = vrot.lane.b32.xlu0 %v820, 107
  %v954 = vpop.permute.xlu0 %953
  %955 = vrot.lane.b32.xlu0 %v821, 107
  %v956 = vpop.permute.xlu0 %955
  %957 = vrot.lane.b32.xlu0 %v822, 107
  %v958 = vpop.permute.xlu0 %957
  %959 = vrot.lane.b32.xlu0 %v823, 107
  %v960 = vpop.permute.xlu0 %959
  %961 = vrot.lane.b32.xlu0 %v824, 107
  %v962 = vpop.permute.xlu0 %961
  %963 = vrot.lane.b32.xlu0 %v825, 107
  %v964 = vpop.permute.xlu0 %963
  %vm965 = vcmask 875520
  %v966 = vsel %vm965, %v954, %v956
  %v967 = vsel %vm965, %v956, %v958
  %v968 = vsel %vm965, %v958, %v960
  %v969 = vsel %vm965, %v960, %v962
  %v970 = vsel %vm965, %v962, %v964
  %v977 = vsel %vm947, %v966, %v916
  %v978 = vsel %vm948, %v967, %v917
  %v979 = vsel %vm949, %v968, %v918
  %v980 = vsel %vm950, %v969, %v919
  %v981 = vsel %vm951, %v970, %v920
  %v982 = vsel %vm952, %v964, %v921
  %989 = vrot.lane.b32.xlu0 %v977, 19
  %v990 = vpop.permute.xlu0 %989
  %991 = vrot.lane.b32.xlu0 %v978, 19
  %v992 = vpop.permute.xlu0 %991
  %993 = vrot.lane.b32.xlu0 %v979, 19
  %v994 = vpop.permute.xlu0 %993
  %995 = vrot.lane.b32.xlu0 %v980, 19
  %v996 = vpop.permute.xlu0 %995
  %997 = vrot.lane.b32.xlu0 %v981, 19
  %v998 = vpop.permute.xlu0 %997
  %999 = vrot.lane.b32.xlu0 %v982, 19
  %v1000 = vpop.permute.xlu0 %999
  %v1001 = vsel %vm759, %v990, %v992
  %v1002 = vsel %vm759, %v992, %v994
  %v1003 = vsel %vm759, %v994, %v996
  %v1004 = vsel %vm759, %v996, %v998
  %v1005 = vsel %vm759, %v998, %v1000
  %1012 = vst.msk [vmem:[#allocation3] sm:$0xff] %vm792, %v990
  %1013 = vst [vmem:[#allocation3 + $0x8] sm:$0xff] %v1001
  %1014 = vst [vmem:[#allocation3 + $0x10] sm:$0xff] %v1002
  %1015 = vst [vmem:[#allocation3 + $0x18] sm:$0xff] %v1003
  %1016 = vst [vmem:[#allocation3 + $0x20] sm:$0xff] %v1004
  %1017 = vst.msk [vmem:[#allocation3 + $0x28] sm:$0xff] %vm798, %v1005
  %v1018 = vld [vmem:[#allocation3] sm:$0xff]
  %v1019 = vld [vmem:[#allocation3 + $0x8] sm:$0xff]
  %v1020 = vld [vmem:[#allocation3 + $0x10] sm:$0xff]
  %v1021 = vld [vmem:[#allocation3 + $0x18] sm:$0xff]
  %v1022 = vld [vmem:[#allocation3 + $0x20] sm:$0xff]
  %v1023 = vld [vmem:[#allocation3 + $0x28] sm:$0xff]
  %1024 = vst [vmem:[#allocation4] sm:$0xff] %v1018
  %1025 = vst [vmem:[#allocation4 + $0x8] sm:$0xff] %v1019
  %1026 = vst [vmem:[#allocation4 + $0x10] sm:$0xff] %v1020
  %1027 = vst [vmem:[#allocation4 + $0x18] sm:$0xff] %v1021
  %1028 = vst [vmem:[#allocation4 + $0x20] sm:$0xff] %v1022
  %1029 = vst.msk [vmem:[#allocation4 + $0x28] sm:$0xff] %vm41, %v1023
  %v1030 = vld [vmem:[#allocation3] sm:$0xff]
  %v1031 = vld [vmem:[#allocation3 + $0x8] sm:$0xff]
  %v1032 = vld [vmem:[#allocation3 + $0x10] sm:$0xff]
  %v1033 = vld [vmem:[#allocation3 + $0x18] sm:$0xff]
  %v1034 = vld [vmem:[#allocation3 + $0x20] sm:$0xff]
  %v1035 = vld [vmem:[#allocation3 + $0x28] sm:$0xff]
  %1042 = vrot.lane.b32.xlu0 %v1030, 127
  %v1043 = vpop.permute.xlu0 %1042
  %1044 = vrot.lane.b32.xlu0 %v1031, 127
  %v1045 = vpop.permute.xlu0 %1044
  %1046 = vrot.lane.b32.xlu0 %v1032, 127
  %v1047 = vpop.permute.xlu0 %1046
  %1048 = vrot.lane.b32.xlu0 %v1033, 127
  %v1049 = vpop.permute.xlu0 %1048
  %1050 = vrot.lane.b32.xlu0 %v1034, 127
  %v1051 = vpop.permute.xlu0 %1050
  %1052 = vrot.lane.b32.xlu0 %v1035, 127
  %v1053 = vpop.permute.xlu0 %1052
  %v1054 = vsel %vm67, %v1043, %v1045
  %v1055 = vsel %vm67, %v1045, %v1047
  %v1056 = vsel %vm67, %v1047, %v1049
  %v1057 = vsel %vm67, %v1049, %v1051
  %v1058 = vsel %vm67, %v1051, %v1053
  %1065 = vst [vmem:[#allocation4 + $0x30] sm:$0xff] %v1054
  %1066 = vst [vmem:[#allocation4 + $0x38] sm:$0xff] %v1055
  %1067 = vst [vmem:[#allocation4 + $0x40] sm:$0xff] %v1056
  %1068 = vst [vmem:[#allocation4 + $0x48] sm:$0xff] %v1057
  %1069 = vst [vmem:[#allocation4 + $0x50] sm:$0xff] %v1058
  %1070 = vst.msk [vmem:[#allocation4 + $0x58] sm:$0xff] %vm41, %v1053
  %v1071 = vld [vmem:[#allocation3] sm:$0xff]
  %v1072 = vld [vmem:[#allocation3 + $0x8] sm:$0xff]
  %v1073 = vld [vmem:[#allocation3 + $0x10] sm:$0xff]
  %v1074 = vld [vmem:[#allocation3 + $0x18] sm:$0xff]
  %v1075 = vld [vmem:[#allocation3 + $0x20] sm:$0xff]
  %v1076 = vld [vmem:[#allocation3 + $0x28] sm:$0xff]
  %1083 = vrot.lane.b32.xlu0 %v1071, 126
  %v1084 = vpop.permute.xlu0 %1083
  %1085 = vrot.lane.b32.xlu0 %v1072, 126
  %v1086 = vpop.permute.xlu0 %1085
  %1087 = vrot.lane.b32.xlu0 %v1073, 126
  %v1088 = vpop.permute.xlu0 %1087
  %1089 = vrot.lane.b32.xlu0 %v1074, 126
  %v1090 = vpop.permute.xlu0 %1089
  %1091 = vrot.lane.b32.xlu0 %v1075, 126
  %v1092 = vpop.permute.xlu0 %1091
  %1093 = vrot.lane.b32.xlu0 %v1076, 126
  %v1094 = vpop.permute.xlu0 %1093
  %v1095 = vsel %vm109, %v1084, %v1086
  %v1096 = vsel %vm109, %v1086, %v1088
  %v1097 = vsel %vm109, %v1088, %v1090
  %v1098 = vsel %vm109, %v1090, %v1092
  %v1099 = vsel %vm109, %v1092, %v1094
  %1106 = vst [vmem:[#allocation4 + $0x60] sm:$0xff] %v1095
  %1107 = vst [vmem:[#allocation4 + $0x68] sm:$0xff] %v1096
  %1108 = vst [vmem:[#allocation4 + $0x70] sm:$0xff] %v1097
  %1109 = vst [vmem:[#allocation4 + $0x78] sm:$0xff] %v1098
  %1110 = vst [vmem:[#allocation4 + $0x80] sm:$0xff] %v1099
  %1111 = vst.msk [vmem:[#allocation4 + $0x88] sm:$0xff] %vm41, %v1094
  %v1112 = vld [vmem:[#allocation3] sm:$0xff]
  %v1113 = vld [vmem:[#allocation3 + $0x8] sm:$0xff]
  %v1114 = vld [vmem:[#allocation3 + $0x10] sm:$0xff]
  %v1115 = vld [vmem:[#allocation3 + $0x18] sm:$0xff]
  %v1116 = vld [vmem:[#allocation3 + $0x20] sm:$0xff]
  %v1117 = vld [vmem:[#allocation3 + $0x28] sm:$0xff]
  %1124 = vrot.lane.b32.xlu0 %v1112, 110
  %v1125 = vpop.permute.xlu0 %1124
  %1126 = vrot.lane.b32.xlu0 %v1113, 110
  %v1127 = vpop.permute.xlu0 %1126
  %1128 = vrot.lane.b32.xlu0 %v1114, 110
  %v1129 = vpop.permute.xlu0 %1128
  %1130 = vrot.lane.b32.xlu0 %v1115, 110
  %v1131 = vpop.permute.xlu0 %1130
  %1132 = vrot.lane.b32.xlu0 %v1116, 110
  %v1133 = vpop.permute.xlu0 %1132
  %1134 = vrot.lane.b32.xlu0 %v1117, 110
  %v1135 = vpop.permute.xlu0 %1134
  %v1136 = vsel %vm151, %v1125, %v1127
  %v1137 = vsel %vm151, %v1127, %v1129
  %v1138 = vsel %vm151, %v1129, %v1131
  %v1139 = vsel %vm151, %v1131, %v1133
  %v1140 = vsel %vm151, %v1133, %v1135
  %1147 = vst [vmem:[#allocation4 + $0x90] sm:$0xff] %v1136
  %1148 = vst [vmem:[#allocation4 + $0x98] sm:$0xff] %v1137
  %1149 = vst [vmem:[#allocation4 + $0xa0] sm:$0xff] %v1138
  %1150 = vst [vmem:[#allocation4 + $0xa8] sm:$0xff] %v1139
  %1151 = vst [vmem:[#allocation4 + $0xb0] sm:$0xff] %v1140
  %1152 = vst.msk [vmem:[#allocation4 + $0xb8] sm:$0xff] %vm41, %v1135
  %v1153 = vld [vmem:[#allocation3] sm:$0xff]
  %v1154 = vld [vmem:[#allocation3 + $0x8] sm:$0xff]
  %v1155 = vld [vmem:[#allocation3 + $0x10] sm:$0xff]
  %v1156 = vld [vmem:[#allocation3 + $0x18] sm:$0xff]
  %v1157 = vld [vmem:[#allocation3 + $0x20] sm:$0xff]
  %v1158 = vld [vmem:[#allocation3 + $0x28] sm:$0xff]
  %1165 = vrot.lane.b32.xlu0 %v1153, 109
  %v1166 = vpop.permute.xlu0 %1165
  %1167 = vrot.lane.b32.xlu0 %v1154, 109
  %v1168 = vpop.permute.xlu0 %1167
  %1169 = vrot.lane.b32.xlu0 %v1155, 109
  %v1170 = vpop.permute.xlu0 %1169
  %1171 = vrot.lane.b32.xlu0 %v1156, 109
  %v1172 = vpop.permute.xlu0 %1171
  %1173 = vrot.lane.b32.xlu0 %v1157, 109
  %v1174 = vpop.permute.xlu0 %1173
  %1175 = vrot.lane.b32.xlu0 %v1158, 109
  %v1176 = vpop.permute.xlu0 %1175
  %v1177 = vsel %vm193, %v1166, %v1168
  %v1178 = vsel %vm193, %v1168, %v1170
  %v1179 = vsel %vm193, %v1170, %v1172
  %v1180 = vsel %vm193, %v1172, %v1174
  %v1181 = vsel %vm193, %v1174, %v1176
  %1188 = vst [vmem:[#allocation4 + $0xc0] sm:$0xff] %v1177
  %1189 = vst [vmem:[#allocation4 + $0xc8] sm:$0xff] %v1178
  %1190 = vst [vmem:[#allocation4 + $0xd0] sm:$0xff] %v1179
  %1191 = vst [vmem:[#allocation4 + $0xd8] sm:$0xff] %v1180
  %1192 = vst [vmem:[#allocation4 + $0xe0] sm:$0xff] %v1181
  %1193 = vst.msk [vmem:[#allocation4 + $0xe8] sm:$0xff] %vm41, %v1176
  %v1194 = vld [vmem:[#allocation3] sm:$0xff]
  %v1195 = vld [vmem:[#allocation3 + $0x8] sm:$0xff]
  %v1196 = vld [vmem:[#allocation3 + $0x10] sm:$0xff]
  %v1197 = vld [vmem:[#allocation3 + $0x18] sm:$0xff]
  %v1198 = vld [vmem:[#allocation3 + $0x20] sm:$0xff]
  %v1199 = vld [vmem:[#allocation3 + $0x28] sm:$0xff]
  %1206 = vrot.lane.b32.xlu0 %v1194, 108
  %v1207 = vpop.permute.xlu0 %1206
  %1208 = vrot.lane.b32.xlu0 %v1195, 108
  %v1209 = vpop.permute.xlu0 %1208
  %1210 = vrot.lane.b32.xlu0 %v1196, 108
  %v1211 = vpop.permute.xlu0 %1210
  %1212 = vrot.lane.b32.xlu0 %v1197, 108
  %v1213 = vpop.permute.xlu0 %1212
  %1214 = vrot.lane.b32.xlu0 %v1198, 108
  %v1215 = vpop.permute.xlu0 %1214
  %1216 = vrot.lane.b32.xlu0 %v1199, 108
  %v1217 = vpop.permute.xlu0 %1216
  %v1218 = vsel %vm235, %v1207, %v1209
  %v1219 = vsel %vm235, %v1209, %v1211
  %v1220 = vsel %vm235, %v1211, %v1213
  %v1221 = vsel %vm235, %v1213, %v1215
  %v1222 = vsel %vm235, %v1215, %v1217
  %1229 = vst [vmem:[#allocation4 + $0xf0] sm:$0xff] %v1218
  %1230 = vst [vmem:[#allocation4 + $0xf8] sm:$0xff] %v1219
  %1231 = vst [vmem:[#allocation4 + $0x100] sm:$0xff] %v1220
  %1232 = vst [vmem:[#allocation4 + $0x108] sm:$0xff] %v1221
  %1233 = vst [vmem:[#allocation4 + $0x110] sm:$0xff] %v1222
  %1234 = vst.msk [vmem:[#allocation4 + $0x118] sm:$0xff] %vm41, %v1217
  %v1235 = vld [vmem:[#allocation3] sm:$0xff]
  %v1236 = vld [vmem:[#allocation3 + $0x8] sm:$0xff]
  %v1237 = vld [vmem:[#allocation3 + $0x10] sm:$0xff]
  %v1238 = vld [vmem:[#allocation3 + $0x18] sm:$0xff]
  %v1239 = vld [vmem:[#allocation3 + $0x20] sm:$0xff]
  %v1240 = vld [vmem:[#allocation3 + $0x28] sm:$0xff]
  %1247 = vrot.lane.b32.xlu0 %v1235, 92
  %v1248 = vpop.permute.xlu0 %1247
  %1249 = vrot.lane.b32.xlu0 %v1236, 92
  %v1250 = vpop.permute.xlu0 %1249
  %1251 = vrot.lane.b32.xlu0 %v1237, 92
  %v1252 = vpop.permute.xlu0 %1251
  %1253 = vrot.lane.b32.xlu0 %v1238, 92
  %v1254 = vpop.permute.xlu0 %1253
  %1255 = vrot.lane.b32.xlu0 %v1239, 92
  %v1256 = vpop.permute.xlu0 %1255
  %1257 = vrot.lane.b32.xlu0 %v1240, 92
  %v1258 = vpop.permute.xlu0 %1257
  %v1259 = vsel %vm277, %v1248, %v1250
  %v1260 = vsel %vm277, %v1250, %v1252
  %v1261 = vsel %vm277, %v1252, %v1254
  %v1262 = vsel %vm277, %v1254, %v1256
  %v1263 = vsel %vm277, %v1256, %v1258
  %1270 = vst [vmem:[#allocation4 + $0x120] sm:$0xff] %v1259
  %1271 = vst [vmem:[#allocation4 + $0x128] sm:$0xff] %v1260
  %1272 = vst [vmem:[#allocation4 + $0x130] sm:$0xff] %v1261
  %1273 = vst [vmem:[#allocation4 + $0x138] sm:$0xff] %v1262
  %1274 = vst [vmem:[#allocation4 + $0x140] sm:$0xff] %v1263
  %1275 = vst.msk [vmem:[#allocation4 + $0x148] sm:$0xff] %vm41, %v1258
  %v1276 = vld [vmem:[#allocation3] sm:$0xff]
  %v1277 = vld [vmem:[#allocation3 + $0x8] sm:$0xff]
  %v1278 = vld [vmem:[#allocation3 + $0x10] sm:$0xff]
  %v1279 = vld [vmem:[#allocation3 + $0x18] sm:$0xff]
  %v1280 = vld [vmem:[#allocation3 + $0x20] sm:$0xff]
  %v1281 = vld [vmem:[#allocation3 + $0x28] sm:$0xff]
  %1288 = vrot.lane.b32.xlu0 %v1276, 91
  %v1289 = vpop.permute.xlu0 %1288
  %1290 = vrot.lane.b32.xlu0 %v1277, 91
  %v1291 = vpop.permute.xlu0 %1290
  %1292 = vrot.lane.b32.xlu0 %v1278, 91
  %v1293 = vpop.permute.xlu0 %1292
  %1294 = vrot.lane.b32.xlu0 %v1279, 91
  %v1295 = vpop.permute.xlu0 %1294
  %1296 = vrot.lane.b32.xlu0 %v1280, 91
  %v1297 = vpop.permute.xlu0 %1296
  %1298 = vrot.lane.b32.xlu0 %v1281, 91
  %v1299 = vpop.permute.xlu0 %1298
  %v1300 = vsel %vm319, %v1289, %v1291
  %v1301 = vsel %vm319, %v1291, %v1293
  %v1302 = vsel %vm319, %v1293, %v1295
  %v1303 = vsel %vm319, %v1295, %v1297
  %v1304 = vsel %vm319, %v1297, %v1299
  %1311 = vst [vmem:[#allocation4 + $0x150] sm:$0xff] %v1300
  %1312 = vst [vmem:[#allocation4 + $0x158] sm:$0xff] %v1301
  %1313 = vst [vmem:[#allocation4 + $0x160] sm:$0xff] %v1302
  %1314 = vst [vmem:[#allocation4 + $0x168] sm:$0xff] %v1303
  %1315 = vst [vmem:[#allocation4 + $0x170] sm:$0xff] %v1304
  %1316 = vst.msk [vmem:[#allocation4 + $0x178] sm:$0xff] %vm41, %v1299
  %v1317 = vld [vmem:[#allocation3] sm:$0xff]
  %v1318 = vld [vmem:[#allocation3 + $0x8] sm:$0xff]
  %v1319 = vld [vmem:[#allocation3 + $0x10] sm:$0xff]
  %v1320 = vld [vmem:[#allocation3 + $0x18] sm:$0xff]
  %v1321 = vld [vmem:[#allocation3 + $0x20] sm:$0xff]
  %v1322 = vld [vmem:[#allocation3 + $0x28] sm:$0xff]
  %1329 = vrot.lane.b32.xlu0 %v1317, 90
  %v1330 = vpop.permute.xlu0 %1329
  %1331 = vrot.lane.b32.xlu0 %v1318, 90
  %v1332 = vpop.permute.xlu0 %1331
  %1333 = vrot.lane.b32.xlu0 %v1319, 90
  %v1334 = vpop.permute.xlu0 %1333
  %1335 = vrot.lane.b32.xlu0 %v1320, 90
  %v1336 = vpop.permute.xlu0 %1335
  %1337 = vrot.lane.b32.xlu0 %v1321, 90
  %v1338 = vpop.permute.xlu0 %1337
  %1339 = vrot.lane.b32.xlu0 %v1322, 90
  %v1340 = vpop.permute.xlu0 %1339
  %v1341 = vsel %vm361, %v1330, %v1332
  %v1342 = vsel %vm361, %v1332, %v1334
  %v1343 = vsel %vm361, %v1334, %v1336
  %v1344 = vsel %vm361, %v1336, %v1338
  %v1345 = vsel %vm361, %v1338, %v1340
  %1352 = vst [vmem:[#allocation4 + $0x180] sm:$0xff] %v1341
  %1353 = vst [vmem:[#allocation4 + $0x188] sm:$0xff] %v1342
  %1354 = vst [vmem:[#allocation4 + $0x190] sm:$0xff] %v1343
  %1355 = vst [vmem:[#allocation4 + $0x198] sm:$0xff] %v1344
  %1356 = vst [vmem:[#allocation4 + $0x1a0] sm:$0xff] %v1345
  %1357 = vst.msk [vmem:[#allocation4 + $0x1a8] sm:$0xff] %vm41, %v1340
  %v1358 = vld [vmem:[%s5] sm:$0xff]
  %v1359 = vld [vmem:[#allocation4] sm:$0xff]
  %v1360 = vld [vmem:[#allocation4 + $0x8] sm:$0xff]
  %v1361 = vld [vmem:[#allocation4 + $0x10] sm:$0xff]
  %v1362 = vld [vmem:[#allocation4 + $0x18] sm:$0xff]
  %v1363 = vld [vmem:[#allocation4 + $0x20] sm:$0xff]
  %v1364 = vld [vmem:[#allocation4 + $0x28] sm:$0xff]
  %v1365 = vld [vmem:[#allocation4 + $0x30] sm:$0xff]
  %v1366 = vld [vmem:[#allocation4 + $0x38] sm:$0xff]
  %v1367 = vld [vmem:[#allocation4 + $0x40] sm:$0xff]
  %v1368 = vld [vmem:[#allocation4 + $0x48] sm:$0xff]
  %v1369 = vld [vmem:[#allocation4 + $0x50] sm:$0xff]
  %v1370 = vld [vmem:[#allocation4 + $0x58] sm:$0xff]
  %v1371 = vld [vmem:[#allocation4 + $0x60] sm:$0xff]
  %v1372 = vld [vmem:[#allocation4 + $0x68] sm:$0xff]
  %v1373 = vld [vmem:[#allocation4 + $0x70] sm:$0xff]
  %v1374 = vld [vmem:[#allocation4 + $0x78] sm:$0xff]
  %v1375 = vld [vmem:[#allocation4 + $0x80] sm:$0xff]
  %v1376 = vld [vmem:[#allocation4 + $0x88] sm:$0xff]
  %v1377 = vld [vmem:[#allocation4 + $0x90] sm:$0xff]
  %v1378 = vld [vmem:[#allocation4 + $0x98] sm:$0xff]
  %v1379 = vld [vmem:[#allocation4 + $0xa0] sm:$0xff]
  %v1380 = vld [vmem:[#allocation4 + $0xa8] sm:$0xff]
  %v1381 = vld [vmem:[#allocation4 + $0xb0] sm:$0xff]
  %v1382 = vld [vmem:[#allocation4 + $0xb8] sm:$0xff]
  %v1383 = vld [vmem:[#allocation4 + $0xc0] sm:$0xff]
  %v1384 = vld [vmem:[#allocation4 + $0xc8] sm:$0xff]
  %v1385 = vld [vmem:[#allocation4 + $0xd0] sm:$0xff]
  %v1386 = vld [vmem:[#allocation4 + $0xd8] sm:$0xff]
  %v1387 = vld [vmem:[#allocation4 + $0xe0] sm:$0xff]
  %v1388 = vld [vmem:[#allocation4 + $0xe8] sm:$0xff]
  %v1389 = vld [vmem:[#allocation4 + $0xf0] sm:$0xff]
  %v1390 = vld [vmem:[#allocation4 + $0xf8] sm:$0xff]
  %v1391 = vld [vmem:[#allocation4 + $0x100] sm:$0xff]
  %v1392 = vld [vmem:[#allocation4 + $0x108] sm:$0xff]
  %v1393 = vld [vmem:[#allocation4 + $0x110] sm:$0xff]
  %v1394 = vld [vmem:[#allocation4 + $0x118] sm:$0xff]
  %v1395 = vld [vmem:[#allocation4 + $0x120] sm:$0xff]
  %v1396 = vld [vmem:[#allocation4 + $0x128] sm:$0xff]
  %v1397 = vld [vmem:[#allocation4 + $0x130] sm:$0xff]
  %v1398 = vld [vmem:[#allocation4 + $0x138] sm:$0xff]
  %v1399 = vld [vmem:[#allocation4 + $0x140] sm:$0xff]
  %v1400 = vld [vmem:[#allocation4 + $0x148] sm:$0xff]
  %v1401 = vld [vmem:[#allocation4 + $0x150] sm:$0xff]
  %v1402 = vld [vmem:[#allocation4 + $0x158] sm:$0xff]
  %v1403 = vld [vmem:[#allocation4 + $0x160] sm:$0xff]
  %v1404 = vld [vmem:[#allocation4 + $0x168] sm:$0xff]
  %v1405 = vld [vmem:[#allocation4 + $0x170] sm:$0xff]
  %v1406 = vld [vmem:[#allocation4 + $0x178] sm:$0xff]
  %v1407 = vld [vmem:[#allocation4 + $0x180] sm:$0xff]
  %v1408 = vld [vmem:[#allocation4 + $0x188] sm:$0xff]
  %v1409 = vld [vmem:[#allocation4 + $0x190] sm:$0xff]
  %v1410 = vld [vmem:[#allocation4 + $0x198] sm:$0xff]
  %v1411 = vld [vmem:[#allocation4 + $0x1a0] sm:$0xff]
  %v1412 = vld [vmem:[#allocation4 + $0x1a8] sm:$0xff]
  %v1414 = vsel %vm434, %v1358, 0
  %1416 = vmatprep.subr.mxu0 %v1360
  %1417 = vmatpush1.msra.mxu0 %v1359
  %1418 = vmatprep.subr.mxu0 %v1366
  %1419 = vmatpush1.msra.mxu0 %v1365
  %1420 = vmatprep.subr.mxu0 %v1372
  %1421 = vmatpush1.msra.mxu0 %v1371
  %1422 = vmatprep.subr.mxu0 %v1378
  %1423 = vmatpush1.msra.mxu0 %v1377
  %1424 = vmatprep.subr.mxu0 %v1384
  %1425 = vmatpush1.msra.mxu0 %v1383
  %1426 = vmatprep.subr.mxu0 %v1390
  %1427 = vmatpush1.msra.mxu0 %v1389
  %1428 = vmatprep.subr.mxu0 %v1396
  %1429 = vmatpush1.msra.mxu0 %v1395
  %1430 = vmatprep.subr.mxu0 %v1402
  %1431 = vmatpush1.msra.mxu0 %v1401
  %1432 = vmatprep.subr.mxu0 %v1408
  %1433 = vmatpush1.msra.mxu0 %v1407
  %1434 = vmatprep.subr.mxu0 0.0
  %1435 = vmatpush1.msra.mxu0 0.0
  %1436 = vmatprep.subr.mxu0 0.0
  %1437 = vmatpush1.msra.mxu0 0.0
  %1438 = vmatprep.subr.mxu0 0.0
  %1439 = vmatpush1.msra.mxu0 0.0
  %1440 = vmatprep.subr.mxu0 0.0
  %1441 = vmatpush1.msra.mxu0 0.0
  %1442 = vmatprep.subr.mxu0 0.0
  %1443 = vmatpush1.msra.mxu0 0.0
  %1444 = vmatprep.subr.mxu0 0.0
  %1445 = vmatpush1.msra.mxu0 0.0
  %1446 = vmatprep.subr.mxu0 0.0
  %1447 = vmatpush1.msra.mxu0 0.0
  %1448 = vmatprep.subr.mxu0 0.0
  %1449 = vmatpush1.msra.mxu0 0.0
  %1450 = vmatprep.subr.mxu0 0.0
  %1451 = vmatpush1.msra.mxu0 0.0
  %1452 = vmatprep.subr.mxu0 0.0
  %1453 = vmatpush1.msra.mxu0 0.0
  %1454 = vmatprep.subr.mxu0 0.0
  %1455 = vmatpush1.msra.mxu0 0.0
  %1456 = vmatprep.subr.mxu0 0.0
  %1457 = vmatpush1.msra.mxu0 0.0
  %1458 = vmatprep.subr.mxu0 0.0
  %1459 = vmatpush1.msra.mxu0 0.0
  %1460 = vmatprep.subr.mxu0 0.0
  %1461 = vmatpush1.msra.mxu0 0.0
  %1462 = vmatprep.subr.mxu0 0.0
  %1463 = vmatpush1.msra.mxu0 0.0
  %1464 = vmatprep.subr.mxu0 0.0
  %1465 = vmatpush1.msra.mxu0 0.0
  %1466 = vmatprep.subr.mxu0 0.0
  %1467 = vmatpush1.msra.mxu0 0.0
  %1468 = vmatprep.subr.mxu0 0.0
  %1469 = vmatpush1.msra.mxu0 0.0
  %1470 = vmatprep.subr.mxu0 0.0
  %1471 = vmatpush1.msra.mxu0 0.0
  %1472 = vmatprep.subr.mxu0 0.0
  %1473 = vmatpush1.msra.mxu0 0.0
  %1474 = vmatprep.subr.mxu0 0.0
  %1475 = vmatpush1.msra.mxu0 0.0
  %1476 = vmatprep.subr.mxu0 0.0
  %1477 = vmatpush1.msra.mxu0 0.0
  %1478 = vmatprep.subr.mxu0 0.0
  %1479 = vmatpush1.msra.mxu0 0.0
  %1480 = vmatprep.mubr.f32.mxu0 0.0
  %1481 = vmatmul.mubr.f32.gmra.mrb[0].mxu0 %v1414
  %v1482 = vpop.f32.mrb[0].mxu0
  %v1483 = vadd.f32 0.0, %v1482
  %v1484 = vpop.f32.mrb[0].mxu0
  %v1485 = vadd.f32 0.0, %v1484
  %1486 = vdwg.mxu0
  %1487 = vmatprep.subr.mxu0 %v1362
  %1488 = vmatpush1.msra.mxu0 %v1361
  %1489 = vmatprep.subr.mxu0 %v1368
  %1490 = vmatpush1.msra.mxu0 %v1367
  %1491 = vmatprep.subr.mxu0 %v1374
  %1492 = vmatpush1.msra.mxu0 %v1373
  %1493 = vmatprep.subr.mxu0 %v1380
  %1494 = vmatpush1.msra.mxu0 %v1379
  %1495 = vmatprep.subr.mxu0 %v1386
  %1496 = vmatpush1.msra.mxu0 %v1385
  %1497 = vmatprep.subr.mxu0 %v1392
  %1498 = vmatpush1.msra.mxu0 %v1391
  %1499 = vmatprep.subr.mxu0 %v1398
  %1500 = vmatpush1.msra.mxu0 %v1397
  %1501 = vmatprep.subr.mxu0 %v1404
  %1502 = vmatpush1.msra.mxu0 %v1403
  %1503 = vmatprep.subr.mxu0 %v1410
  %1504 = vmatpush1.msra.mxu0 %v1409
  %1505 = vmatprep.subr.mxu0 0.0
  %1506 = vmatpush1.msra.mxu0 0.0
  %1507 = vmatprep.subr.mxu0 0.0
  %1508 = vmatpush1.msra.mxu0 0.0
  %1509 = vmatprep.subr.mxu0 0.0
  %1510 = vmatpush1.msra.mxu0 0.0
  %1511 = vmatprep.subr.mxu0 0.0
  %1512 = vmatpush1.msra.mxu0 0.0
  %1513 = vmatprep.subr.mxu0 0.0
  %1514 = vmatpush1.msra.mxu0 0.0
  %1515 = vmatprep.subr.mxu0 0.0
  %1516 = vmatpush1.msra.mxu0 0.0
  %1517 = vmatprep.subr.mxu0 0.0
  %1518 = vmatpush1.msra.mxu0 0.0
  %1519 = vmatprep.subr.mxu0 0.0
  %1520 = vmatpush1.msra.mxu0 0.0
  %1521 = vmatprep.subr.mxu0 0.0
  %1522 = vmatpush1.msra.mxu0 0.0
  %1523 = vmatprep.subr.mxu0 0.0
  %1524 = vmatpush1.msra.mxu0 0.0
  %1525 = vmatprep.subr.mxu0 0.0
  %1526 = vmatpush1.msra.mxu0 0.0
  %1527 = vmatprep.subr.mxu0 0.0
  %1528 = vmatpush1.msra.mxu0 0.0
  %1529 = vmatprep.subr.mxu0 0.0
  %1530 = vmatpush1.msra.mxu0 0.0
  %1531 = vmatprep.subr.mxu0 0.0
  %1532 = vmatpush1.msra.mxu0 0.0
  %1533 = vmatprep.subr.mxu0 0.0
  %1534 = vmatpush1.msra.mxu0 0.0
  %1535 = vmatprep.subr.mxu0 0.0
  %1536 = vmatpush1.msra.mxu0 0.0
  %1537 = vmatprep.subr.mxu0 0.0
  %1538 = vmatpush1.msra.mxu0 0.0
  %1539 = vmatprep.subr.mxu0 0.0
  %1540 = vmatpush1.msra.mxu0 0.0
  %1541 = vmatprep.subr.mxu0 0.0
  %1542 = vmatpush1.msra.mxu0 0.0
  %1543 = vmatprep.subr.mxu0 0.0
  %1544 = vmatpush1.msra.mxu0 0.0
  %1545 = vmatprep.subr.mxu0 0.0
  %1546 = vmatpush1.msra.mxu0 0.0
  %1547 = vmatprep.subr.mxu0 0.0
  %1548 = vmatpush1.msra.mxu0 0.0
  %1549 = vmatprep.subr.mxu0 0.0
  %1550 = vmatpush1.msra.mxu0 0.0
  %1551 = vmatprep.mubr.f32.mxu0 0.0
  %1552 = vmatmul.mubr.f32.gmra.mrb[0].mxu0 %v1414
  %v1553 = vpop.f32.mrb[0].mxu0
  %v1554 = vadd.f32 0.0, %v1553
  %v1555 = vpop.f32.mrb[0].mxu0
  %v1556 = vadd.f32 0.0, %v1555
  %1557 = vdwg.mxu0
  %1558 = vmatprep.subr.mxu0 %v1364
  %1559 = vmatpush1.msra.mxu0 %v1363
  %1560 = vmatprep.subr.mxu0 %v1370
  %1561 = vmatpush1.msra.mxu0 %v1369
  %1562 = vmatprep.subr.mxu0 %v1376
  %1563 = vmatpush1.msra.mxu0 %v1375
  %1564 = vmatprep.subr.mxu0 %v1382
  %1565 = vmatpush1.msra.mxu0 %v1381
  %1566 = vmatprep.subr.mxu0 %v1388
  %1567 = vmatpush1.msra.mxu0 %v1387
  %1568 = vmatprep.subr.mxu0 %v1394
  %1569 = vmatpush1.msra.mxu0 %v1393
  %1570 = vmatprep.subr.mxu0 %v1400
  %1571 = vmatpush1.msra.mxu0 %v1399
  %1572 = vmatprep.subr.mxu0 %v1406
  %1573 = vmatpush1.msra.mxu0 %v1405
  %1574 = vmatprep.subr.mxu0 %v1412
  %1575 = vmatpush1.msra.mxu0 %v1411
  %1576 = vmatprep.subr.mxu0 0.0
  %1577 = vmatpush1.msra.mxu0 0.0
  %1578 = vmatprep.subr.mxu0 0.0
  %1579 = vmatpush1.msra.mxu0 0.0
  %1580 = vmatprep.subr.mxu0 0.0
  %1581 = vmatpush1.msra.mxu0 0.0
  %1582 = vmatprep.subr.mxu0 0.0
  %1583 = vmatpush1.msra.mxu0 0.0
  %1584 = vmatprep.subr.mxu0 0.0
  %1585 = vmatpush1.msra.mxu0 0.0
  %1586 = vmatprep.subr.mxu0 0.0
  %1587 = vmatpush1.msra.mxu0 0.0
  %1588 = vmatprep.subr.mxu0 0.0
  %1589 = vmatpush1.msra.mxu0 0.0
  %1590 = vmatprep.subr.mxu0 0.0
  %1591 = vmatpush1.msra.mxu0 0.0
  %1592 = vmatprep.subr.mxu0 0.0
  %1593 = vmatpush1.msra.mxu0 0.0
  %1594 = vmatprep.subr.mxu0 0.0
  %1595 = vmatpush1.msra.mxu0 0.0
  %1596 = vmatprep.subr.mxu0 0.0
  %1597 = vmatpush1.msra.mxu0 0.0
  %1598 = vmatprep.subr.mxu0 0.0
  %1599 = vmatpush1.msra.mxu0 0.0
  %1600 = vmatprep.subr.mxu0 0.0
  %1601 = vmatpush1.msra.mxu0 0.0
  %1602 = vmatprep.subr.mxu0 0.0
  %1603 = vmatpush1.msra.mxu0 0.0
  %1604 = vmatprep.subr.mxu0 0.0
  %1605 = vmatpush1.msra.mxu0 0.0
  %1606 = vmatprep.subr.mxu0 0.0
  %1607 = vmatpush1.msra.mxu0 0.0
  %1608 = vmatprep.subr.mxu0 0.0
  %1609 = vmatpush1.msra.mxu0 0.0
  %1610 = vmatprep.subr.mxu0 0.0
  %1611 = vmatpush1.msra.mxu0 0.0
  %1612 = vmatprep.subr.mxu0 0.0
  %1613 = vmatpush1.msra.mxu0 0.0
  %1614 = vmatprep.subr.mxu0 0.0
  %1615 = vmatpush1.msra.mxu0 0.0
  %1616 = vmatprep.subr.mxu0 0.0
  %1617 = vmatpush1.msra.mxu0 0.0
  %1618 = vmatprep.subr.mxu0 0.0
  %1619 = vmatpush1.msra.mxu0 0.0
  %1620 = vmatprep.subr.mxu0 0.0
  %1621 = vmatpush1.msra.mxu0 0.0
  %1622 = vmatprep.mubr.f32.mxu0 0.0
  %1623 = vmatmul.mubr.f32.gmra.mrb[0].mxu0 %v1414
  %v1624 = vpop.f32.mrb[0].mxu0
  %v1625 = vadd.f32 0.0, %v1624
  %v1626 = vpop.f32.mrb[0].mxu0
  %v1627 = vadd.f32 0.0, %v1626
  %1628 = vdwg.mxu0
  %v1629 = vmul.f32 %v1483, %v655
  %v1630 = vmul.f32 %v1485, %v659
  %v1631 = vmul.f32 %v1554, %v663
  %v1632 = vmul.f32 %v1556, %v667
  %v1633 = vmul.f32 %v1625, %v671
  %v1634 = vmul.f32 %v1627, %v675
  %v1635 = vadd.f32 %v1629, %v1630
  %v1636 = vadd.f32 %v1635, %v1631
  %v1637 = vadd.f32 %v1636, %v1632
  %v1638 = vadd.f32 %v1637, %v1633
  %v1639 = vsel %vm41, %v1634, 0.0
  %v1640 = vadd.f32 %v1638, %v1639
  %1641 = vadd.xlane.f32.xlu0 %v1640
  %v1642 = vpop.xlane.xlu0 %1641
  %v1643 = vmul.f32 %v1642, 0.001953125
  %v1644 = vsub.f32 %v1483, %v1643
  %v1645 = vsub.f32 %v1485, %v1643
  %v1646 = vsub.f32 %v1554, %v1643
  %v1647 = vsub.f32 %v1556, %v1643
  %v1648 = vsub.f32 %v1625, %v1643
  %v1649 = vsub.f32 %v1627, %v1643
  %v1650 = vmul.f32 %v1644, %v1644
  %v1651 = vmul.f32 %v1645, %v1645
  %v1652 = vmul.f32 %v1646, %v1646
  %v1653 = vmul.f32 %v1647, %v1647
  %v1654 = vmul.f32 %v1648, %v1648
  %v1655 = vmul.f32 %v1649, %v1649
  %v1656 = vmul.f32 %v1650, %v655
  %v1657 = vmul.f32 %v1651, %v659
  %v1658 = vmul.f32 %v1652, %v663
  %v1659 = vmul.f32 %v1653, %v667
  %v1660 = vmul.f32 %v1654, %v671
  %v1661 = vmul.f32 %v1655, %v675
  %v1662 = vadd.f32 %v1656, %v1657
  %v1663 = vadd.f32 %v1662, %v1658
  %v1664 = vadd.f32 %v1663, %v1659
  %v1665 = vadd.f32 %v1664, %v1660
  %v1666 = vsel %vm41, %v1661, 0.0
  %v1667 = vadd.f32 %v1665, %v1666
  %1668 = vadd.xlane.f32.xlu0 %v1667
  %v1669 = vpop.xlane.xlu0 %1668
  %v1670 = vmul.f32 %v1669, 0.001953125
  %v1671 = vld [vmem:[%s6] sm:$0xff]
  %v1672 = vadd.f32 %v1670, 1e-05
  %v1673 = vrsqrt.pop %v1672
  %v1674 = vmul.f32 %v1671, %v1673
  %v1675 = vld [vmem:[%s7] sm:$0xff]
  %v1676 = vmul.f32 %v1643, %v1674
  %v1677 = vsub.f32 %v1675, %v1676
  %1679 = vset.pattern.permute.xlu0 0
  %1680 = vperm.xlu0 %1679, %v1674
  %v1681 = vpop.permute.xlu0 %1680
  %v1683 = vmul.f32 %v1483, %v1681
  %v1684 = vmul.f32 %v1485, %v1681
  %v1685 = vmul.f32 %v1554, %v1681
  %v1686 = vmul.f32 %v1556, %v1681
  %v1687 = vmul.f32 %v1625, %v1681
  %v1688 = vmul.f32 %v1627, %v1681
  %1690 = vset.pattern.permute.xlu0 0
  %1691 = vperm.xlu0 %1690, %v1677
  %v1692 = vpop.permute.xlu0 %1691
  %v1694 = vadd.f32 %v1683, %v1692
  %v1695 = vadd.f32 %v1684, %v1692
  %v1696 = vadd.f32 %v1685, %v1692
  %v1697 = vadd.f32 %v1686, %v1692
  %v1698 = vadd.f32 %v1687, %v1692
  %v1699 = vadd.f32 %v1688, %v1692
  %v1700 = vmax.f32 %v1694, 0.0
  %v1701 = vmax.f32 %v1695, 0.0
  %v1702 = vmax.f32 %v1696, 0.0
  %v1703 = vmax.f32 %v1697, 0.0
  %v1704 = vmax.f32 %v1698, 0.0
  %v1705 = vmax.f32 %v1699, 0.0
  %1706 = vst [vmem:[%s8] sm:$0xff] %v1700
  %1707 = vst [vmem:[%s8 + $0x8] sm:$0xff] %v1701
  %1708 = vst [vmem:[%s8 + $0x10] sm:$0xff] %v1702
  %1709 = vst [vmem:[%s8 + $0x18] sm:$0xff] %v1703
  %1710 = vst [vmem:[%s8 + $0x20] sm:$0xff] %v1704
  %1711 = vst.msk [vmem:[%s8 + $0x28] sm:$0xff] %vm41, %v1705
  // Predicated region
  $region34: #{conv_block_forward.1} parent=0 // pred_check
    _
  $region35: #{conv_block_forward.1} parent=0 // pred_check_branch
    %1713 = sbr.rel (0) target = $region37
  $region36: #{conv_block_forward.1} parent=0 // pred_region
    _
  $region37: #{conv_block_forward.1} parent=0 // pred_fallthru
    _
  // Predicated region
  $region38: #{conv_block_forward.1} parent=0 // pred_check
    _
  $region39: #{conv_block_forward.1} parent=0 // pred_check_branch
    %1715 = sbr.rel (0) target = $region41
  $region40: #{conv_block_forward.1} parent=0 // pred_region
    _
  $region41: #{conv_block_forward.1} parent=0 // pred_fallthru
    _

</llo_original>
